<compile_context>
chip_gen: v7x
topology: tpu7x:2x2x1
jax: 0.10.0
libtpu: 0.0.40
codegen_flags: <defaults>
</compile_context>

<pallas_src>
import jax
import jax.numpy as jnp
from jax import lax
from jax.experimental import pallas as pl
from jax.experimental.pallas import tpu as pltpu

# ---------------- synthetic hyper-parameters (small) ----------------
B = 2            # batch
L = 16           # sequence length
V = 50           # vocab size (len(w2ind) + 2)
E = 100          # embed_size == feature_size (label_conv requires 100 in-channels)
F = 32           # num_filter_maps
Y = 8            # number of labels
KSIZE = 3        # args.filter_size (main conv), padding = floor(K/2)
PAD = KSIZE // 2
LKSIZE = 10      # label conv kernel size, padding = 5
LPAD = LKSIZE // 2
P = 3            # positive labels (== descriptions) per example
DLEN = 12        # description token length
DOUT = DLEN + 2 * LPAD - LKSIZE + 1      # conv1d output length for descriptions (= 13)
LMBDA = 0.01

# padded/aligned sizes
KE = KSIZE * E                            # 300
KE_PAD = ((KE + 127) // 128) * 128        # 384
LKE = LKSIZE * E                          # 1000
LKE_PAD = ((LKE + 127) // 128) * 128      # 1024
DOUT_PAD = ((DOUT + 7) // 8) * 8          # 16


# -------------------- single fused kernel --------------------
def drcnn_kernel(x_ref, wconv_ref, bconv_ref, u_ref, wfin_ref, bfin_ref,
                 d_ref, wl_ref, bl_ref, wfc_ref, bfc_ref,
                 y_ref, bb_ref):
    # ---- main path: im2col Conv1d (one matmul) + bias + tanh ----
    # x_ref: (L, KE_PAD) bf16, wconv_ref: (KE_PAD, F) bf16
    h = jnp.tanh(jnp.dot(x_ref[...], wconv_ref[...],
                         preferred_element_type=jnp.float32) + bconv_ref[...])   # (L, F) f32

    # ---- OutputLayer: att = U.weight @ h^T -> softmax over L -> m = alpha @ h ----
    att = lax.dot_general(u_ref[...], h, (((1,), (1,)), ((), ())),
                          preferred_element_type=jnp.float32)                    # (Y, L)
    att = att - jnp.max(att, axis=1, keepdims=True)
    ea = jnp.exp(att)
    alpha = ea * pl.reciprocal(jnp.sum(ea, axis=1, keepdims=True), approx=True)  # softmax
    m = jnp.dot(alpha, h, preferred_element_type=jnp.float32)                    # (Y, F)

    # y = (final.weight * m).sum(F) + final.bias, emitted lane-dense as (1, Y)
    prod = wfin_ref[...] * m                                                     # (Y, F)
    logits = lax.dot_general(jnp.ones((1, F), jnp.float32), prod,
                             (((1,), (1,)), ((), ())),
                             preferred_element_type=jnp.float32)                 # (1, Y)
    y_ref[...] = logits + bfin_ref[...]

    # ---- description path: label_conv (one im2col matmul for all P descs) ----
    # d_ref: (P*DOUT_PAD, LKE_PAD) bf16, wl_ref: (LKE_PAD, F) bf16
    hd = jnp.tanh(jnp.dot(d_ref[...], wl_ref[...],
                          preferred_element_type=jnp.float32) + bl_ref[...])     # (P*DOUT_PAD, F)
    # mask padded conv positions (tanh output is in (-1,1), so -2 never wins the max)
    row = lax.broadcasted_iota(jnp.int32, hd.shape, 0)
    hd = jnp.where((row % DOUT_PAD) < DOUT, hd, -2.0)
    # global max-pool over length, per description
    pooled = jnp.max(hd.reshape(P, DOUT_PAD, F), axis=1)                         # (P, F)
    # label_fc1: pooled @ W^T + b (one batched matmul for all P descriptions)
    out = lax.dot_general(pooled, wfc_ref[...], (((1,), (1,)), ((), ())),
                          preferred_element_type=jnp.float32) + bfc_ref[...]     # (P, F)
    bb_ref[...] = out


def drcnn_forward(x_col, d_col, wconv_col, bconv, uw, wfin, bfin, wl_col, bl, wfc, bfc):
    y3, bb = pl.pallas_call(
        drcnn_kernel,
        out_shape=(jax.ShapeDtypeStruct((B, 1, Y), jnp.float32),
                   jax.ShapeDtypeStruct((B, P, F), jnp.float32)),
        grid_spec=pltpu.PrefetchScalarGridSpec(
            num_scalar_prefetch=0,
            grid=(B,),
            in_specs=[
                pl.BlockSpec((None, L, KE_PAD), lambda b: (b, 0, 0)),              # x_col
                pl.BlockSpec((KE_PAD, F), lambda b: (0, 0)),                       # wconv_col
                pl.BlockSpec((1, F), lambda b: (0, 0)),                            # bconv
                pl.BlockSpec((Y, F), lambda b: (0, 0)),                            # U.weight
                pl.BlockSpec((Y, F), lambda b: (0, 0)),                            # final.weight
                pl.BlockSpec((1, Y), lambda b: (0, 0)),                            # final.bias
                pl.BlockSpec((None, P * DOUT_PAD, LKE_PAD), lambda b: (b, 0, 0)),  # d_col
                pl.BlockSpec((LKE_PAD, F), lambda b: (0, 0)),                      # wl_col
                pl.BlockSpec((1, F), lambda b: (0, 0)),                            # bl
                pl.BlockSpec((F, F), lambda b: (0, 0)),                            # label_fc1.weight
                pl.BlockSpec((1, F), lambda b: (0, 0)),                            # label_fc1.bias
            ],
            out_specs=[
                pl.BlockSpec((None, 1, Y), lambda b: (b, 0, 0)),                   # logits (lane-dense)
                pl.BlockSpec((None, P, F), lambda b: (b, 0, 0)),                   # b_batch
            ],
        ),
        compiler_params=pltpu.CompilerParams(dimension_semantics=("parallel",)),
    )(x_col, wconv_col, bconv, uw, wfin, bfin, d_col, wl_col, bl, wfc, bfc)
    return y3.reshape(B, Y), bb


# -------------------- wrapper-side helpers (plain JAX glue) --------------------
def im2col(x, ksize, out_len):
    # x: (N, L_padded, E) -> (N, out_len, ksize*E); tap order (k outer, e inner)
    idx = jnp.arange(out_len)[:, None] + jnp.arange(ksize)[None, :]
    cols = x[:, idx, :]                                    # (N, out_len, ksize, E)
    return cols.reshape(x.shape[0], out_len, ksize * x.shape[2])


def xavier(key, shape, fan_in, fan_out):
    limit = (6.0 / (fan_in + fan_out)) ** 0.5
    return jax.random.uniform(key, shape, jnp.float32, -limit, limit)


if __name__ == "__main__":
    key = jax.random.PRNGKey(0)
    ks = jax.random.split(key, 12)

    # WordRep embedding (padding_idx=0 -> zero row); desc_embedding is a clone of it.
    emb = jax.random.normal(ks[0], (V, E), jnp.float32)
    emb = emb.at[0].set(0.0)

    # main Conv1d: PyTorch weight (F, E, K) stored here as (K, E, F).
    # NOTE: when loading real checkpoints, tap j here == torch_weight[:, :, j].T (cross-correlation, no reversal).
    wconv = xavier(ks[1], (KSIZE, E, F), E * KSIZE, F * KSIZE)
    bconv = jax.random.uniform(ks[2], (1, F), jnp.float32, -0.1, 0.1)

    uw   = xavier(ks[3], (Y, F), F, Y)       # OutputLayer.U.weight (U.bias unused in forward)
    wfin = xavier(ks[4], (Y, F), F, Y)       # OutputLayer.final.weight
    bfin = jax.random.uniform(ks[5], (1, Y), jnp.float32, -0.1, 0.1)   # final.bias (lane-dense)

    # label_conv: PyTorch weight (F, 100, 10) stored as (10, 100, F)
    wl  = xavier(ks[6], (LKSIZE, E, F), E * LKSIZE, F * LKSIZE)
    bl  = jax.random.uniform(ks[7], (1, F), jnp.float32, -0.1, 0.1)
    wfc = xavier(ks[8], (F, F), F, F)        # label_fc1.weight
    bfc = jax.random.uniform(ks[9], (1, F), jnp.float32, -0.1, 0.1)

    # ---- inputs ----
    x_tok = jax.random.randint(ks[10], (B, L), 1, V)                  # token ids (0 = padding)
    label_inds = jnp.array([[0, 2, 5], [1, 3, 7]], dtype=jnp.int32)   # (B, P) ascending, as torch.nonzero
    target = jnp.zeros((B, Y), jnp.float32)
    target = target.at[jnp.arange(B)[:, None], label_inds].set(1.0)
    desc_tok = jax.random.randint(ks[11], (B, P, DLEN), 1, V)         # one description per positive label

    # ---- glue: embedding lookup + padding + im2col + alignment padding + bf16 cast ----
    # embed_drop / dropout: identity (eval mode); ELMo branch disabled (use_elmo=False)
    x_emb = emb[x_tok]                                                # (B, L, E)
    x_pad = jnp.pad(x_emb, ((0, 0), (PAD, PAD), (0, 0)))              # (B, L+2p, E)
    x_col = im2col(x_pad, KSIZE, L)                                   # (B, L, K*E)
    x_col = jnp.pad(x_col, ((0, 0), (0, 0), (0, KE_PAD - KE))).astype(jnp.bfloat16)
    wconv_col = jnp.pad(wconv.reshape(KE, F),
                        ((0, KE_PAD - KE), (0, 0))).astype(jnp.bfloat16)

    d_emb = emb[desc_tok].reshape(B * P, DLEN, E)                     # desc_embedding lookup
    d_pad = jnp.pad(d_emb, ((0, 0), (LPAD, LPAD), (0, 0)))            # (B*P, DLEN+2*LPAD, E)
    d_col = im2col(d_pad, LKSIZE, DOUT)                               # (B*P, DOUT, LK*E)
    d_col = jnp.pad(d_col, ((0, 0), (0, DOUT_PAD - DOUT), (0, LKE_PAD - LKE)))
    d_col = d_col.reshape(B, P * DOUT_PAD, LKE_PAD).astype(jnp.bfloat16)
    wl_col = jnp.pad(wl.reshape(LKE, F),
                     ((0, LKE_PAD - LKE), (0, 0))).astype(jnp.bfloat16)

    # ---- single fused Pallas kernel ----
    y, b_batch = drcnn_forward(x_col, d_col, wconv_col, bconv, uw, wfin, bfin,
                               wl_col, bl, wfc, bfc)                  # (B, Y), (B, P, F)

    # ---- losses (tiny reductions, plain JAX glue) ----
    # BCEWithLogitsLoss, mean reduction
    bce = jnp.mean(jnp.maximum(y, 0.0) - y * target + jnp.log1p(jnp.exp(-jnp.abs(y))))
    # _compare_label_embeddings: zi = final.weight[nonzero(target_i)]
    zi = wfin[label_inds]                                             # (B, P, F)
    diffs = LMBDA * jnp.mean((zi - b_batch) ** 2, axis=(1, 2)) * P    # (B,)
    loss = bce + jnp.mean(diffs)

    y, loss = jax.block_until_ready((y, loss))
    assert y.shape == (B, Y) and loss.shape == ()
    print("KERNEL_OK")
</pallas_src>

<mosaic_0001>
module attributes {stable_mosaic.version = 11 : i64} {
  func.func @drcnn_kernel(%arg0: i32, %arg1: memref<1x16x384xbf16, #tpu.memory_space<vmem>>, %arg2: memref<384x32xbf16, #tpu.memory_space<vmem>>, %arg3: memref<1x32xf32, #tpu.memory_space<vmem>>, %arg4: memref<8x32xf32, #tpu.memory_space<vmem>>, %arg5: memref<8x32xf32, #tpu.memory_space<vmem>>, %arg6: memref<1x8xf32, #tpu.memory_space<vmem>>, %arg7: memref<1x48x1024xbf16, #tpu.memory_space<vmem>>, %arg8: memref<1024x32xbf16, #tpu.memory_space<vmem>>, %arg9: memref<1x32xf32, #tpu.memory_space<vmem>>, %arg10: memref<32x32xf32, #tpu.memory_space<vmem>>, %arg11: memref<1x32xf32, #tpu.memory_space<vmem>>, %arg12: memref<1x1x8xf32, #tpu.memory_space<vmem>>, %arg13: memref<1x3x32xf32, #tpu.memory_space<vmem>>) attributes {dimension_semantics = [#tpu.dimension_semantics<parallel>], iteration_bounds = array<i64: 2>, scalar_prefetch = 0 : i64, scratch_operands = 0 : i64, tpu.core_type = #tpu.core_type<tc>, window_params = [{transform_indices = @transform_0, window_bounds = array<i64: 1, 16, 384>}, {pipeline_mode = #tpu.pipeline_mode<synchronous>, transform_indices = @transform_1, window_bounds = array<i64: 384, 32>}, {pipeline_mode = #tpu.pipeline_mode<synchronous>, transform_indices = @transform_2, window_bounds = array<i64: 1, 32>}, {pipeline_mode = #tpu.pipeline_mode<synchronous>, transform_indices = @transform_3, window_bounds = array<i64: 8, 32>}, {pipeline_mode = #tpu.pipeline_mode<synchronous>, transform_indices = @transform_4, window_bounds = array<i64: 8, 32>}, {pipeline_mode = #tpu.pipeline_mode<synchronous>, transform_indices = @transform_5, window_bounds = array<i64: 1, 8>}, {transform_indices = @transform_6, window_bounds = array<i64: 1, 48, 1024>}, {pipeline_mode = #tpu.pipeline_mode<synchronous>, transform_indices = @transform_7, window_bounds = array<i64: 1024, 32>}, {pipeline_mode = #tpu.pipeline_mode<synchronous>, transform_indices = @transform_8, window_bounds = array<i64: 1, 32>}, {pipeline_mode = #tpu.pipeline_mode<synchronous>, transform_indices = @transform_9, window_bounds = array<i64: 32, 32>}, {pipeline_mode = #tpu.pipeline_mode<synchronous>, transform_indices = @transform_10, window_bounds = array<i64: 1, 32>}, {transform_indices = @transform_11, window_bounds = array<i64: 1, 1, 8>}, {transform_indices = @transform_12, window_bounds = array<i64: 1, 3, 32>}]} {
    %c0 = arith.constant 0 : index
    %c0_0 = arith.constant 0 : index
    %c0_1 = arith.constant 0 : index
    %0 = vector.load %arg1[%c0, %c0_0, %c0_1] : memref<1x16x384xbf16, #tpu.memory_space<vmem>>, vector<1x16x384xbf16>
    %1 = vector.shape_cast %0 : vector<1x16x384xbf16> to vector<16x384xbf16>
    %c0_2 = arith.constant 0 : index
    %c0_3 = arith.constant 0 : index
    %2 = vector.load %arg2[%c0_2, %c0_3] : memref<384x32xbf16, #tpu.memory_space<vmem>>, vector<384x32xbf16>
    %cst = arith.constant dense<0.000000e+00> : vector<16x32xf32>
    %3 = tpu.matmul %1, %2, %cst {dimension_numbers = #tpu.dot_dimension_numbers<[1], [0], [0], [1], [0, 0, 1, 1], [], []>} : vector<16x384xbf16>, vector<384x32xbf16>, vector<16x32xf32> -> vector<16x32xf32>
    %c0_4 = arith.constant 0 : index
    %c0_5 = arith.constant 0 : index
    %4 = vector.load %arg3[%c0_4, %c0_5] : memref<1x32xf32, #tpu.memory_space<vmem>>, vector<1x32xf32>
    %5 = vector.broadcast %4 : vector<1x32xf32> to vector<16x32xf32>
    %6 = arith.addf %3, %5 : vector<16x32xf32>
    %7 = math.tanh %6 : vector<16x32xf32>
    %c0_6 = arith.constant 0 : index
    %c0_7 = arith.constant 0 : index
    %8 = vector.load %arg4[%c0_6, %c0_7] : memref<8x32xf32, #tpu.memory_space<vmem>>, vector<8x32xf32>
    %cst_8 = arith.constant dense<0.000000e+00> : vector<8x16xf32>
    %9 = tpu.matmul %8, %7, %cst_8 {dimension_numbers = #tpu.dot_dimension_numbers<[1], [1], [0], [0], [0, 0, 1, 0], [], []>} : vector<8x32xf32>, vector<16x32xf32>, vector<8x16xf32> -> vector<8x16xf32>
    %cst_9 = arith.constant dense<0xFF800000> : vector<8xf32>
    %10 = vector.multi_reduction <maximumf>, %9, %cst_9 [1] : vector<8x16xf32> to vector<8xf32>
    %11 = vector.shape_cast %10 : vector<8xf32> to vector<8x1xf32>
    %12 = vector.broadcast %11 : vector<8x1xf32> to vector<8x16xf32>
    %13 = arith.subf %9, %12 : vector<8x16xf32>
    %14 = math.exp %13 : vector<8x16xf32>
    %cst_10 = arith.constant dense<0.000000e+00> : vector<8xf32>
    %15 = vector.multi_reduction <add>, %14, %cst_10 [1] : vector<8x16xf32> to vector<8xf32>
    %16 = vector.shape_cast %15 : vector<8xf32> to vector<8x1xf32>
    %17 = tpu.reciprocal %16 {approx = true} : vector<8x1xf32> -> vector<8x1xf32>
    %18 = vector.broadcast %17 : vector<8x1xf32> to vector<8x16xf32>
    %19 = arith.mulf %14, %18 : vector<8x16xf32>
    %cst_11 = arith.constant dense<0.000000e+00> : vector<8x32xf32>
    %20 = tpu.matmul %19, %7, %cst_11 {dimension_numbers = #tpu.dot_dimension_numbers<[1], [0], [0], [1], [0, 0, 1, 1], [], []>} : vector<8x16xf32>, vector<16x32xf32>, vector<8x32xf32> -> vector<8x32xf32>
    %c0_12 = arith.constant 0 : index
    %c0_13 = arith.constant 0 : index
    %21 = vector.load %arg5[%c0_12, %c0_13] : memref<8x32xf32, #tpu.memory_space<vmem>>, vector<8x32xf32>
    %22 = arith.mulf %21, %20 : vector<8x32xf32>
    %cst_14 = arith.constant 1.000000e+00 : f32
    %23 = vector.broadcast %cst_14 : f32 to vector<1x32xf32>
    %cst_15 = arith.constant dense<0.000000e+00> : vector<1x8xf32>
    %24 = tpu.matmul %23, %22, %cst_15 {dimension_numbers = #tpu.dot_dimension_numbers<[1], [1], [0], [0], [0, 0, 1, 0], [], []>} : vector<1x32xf32>, vector<8x32xf32>, vector<1x8xf32> -> vector<1x8xf32>
    %c0_16 = arith.constant 0 : index
    %c0_17 = arith.constant 0 : index
    %25 = vector.load %arg6[%c0_16, %c0_17] : memref<1x8xf32, #tpu.memory_space<vmem>>, vector<1x8xf32>
    %26 = arith.addf %24, %25 : vector<1x8xf32>
    %c0_18 = arith.constant 0 : index
    %c0_19 = arith.constant 0 : index
    %c0_20 = arith.constant 0 : index
    %27 = vector.load %arg12[%c0_18, %c0_19, %c0_20] : memref<1x1x8xf32, #tpu.memory_space<vmem>>, vector<1x1x8xf32>
    %28 = vector.shape_cast %27 : vector<1x1x8xf32> to vector<1x8xf32>
    %29 = vector.shape_cast %26 : vector<1x8xf32> to vector<1x1x8xf32>
    tpu.vector_store %arg12[%c0_18, %c0_19, %c0_20], %29 {strides = array<i32>} : memref<1x1x8xf32, #tpu.memory_space<vmem>>, vector<1x1x8xf32>,
    %c0_21 = arith.constant 0 : index
    %c0_22 = arith.constant 0 : index
    %c0_23 = arith.constant 0 : index
    %30 = vector.load %arg7[%c0_21, %c0_22, %c0_23] : memref<1x48x1024xbf16, #tpu.memory_space<vmem>>, vector<1x48x1024xbf16>
    %31 = vector.shape_cast %30 : vector<1x48x1024xbf16> to vector<48x1024xbf16>
    %c0_24 = arith.constant 0 : index
    %c0_25 = arith.constant 0 : index
    %32 = vector.load %arg8[%c0_24, %c0_25] : memref<1024x32xbf16, #tpu.memory_space<vmem>>, vector<1024x32xbf16>
    %cst_26 = arith.constant dense<0.000000e+00> : vector<48x32xf32>
    %33 = tpu.matmul %31, %32, %cst_26 {dimension_numbers = #tpu.dot_dimension_numbers<[1], [0], [0], [1], [0, 0, 1, 1], [], []>} : vector<48x1024xbf16>, vector<1024x32xbf16>, vector<48x32xf32> -> vector<48x32xf32>
    %c0_27 = arith.constant 0 : index
    %c0_28 = arith.constant 0 : index
    %34 = vector.load %arg9[%c0_27, %c0_28] : memref<1x32xf32, #tpu.memory_space<vmem>>, vector<1x32xf32>
    %35 = vector.broadcast %34 : vector<1x32xf32> to vector<48x32xf32>
    %36 = arith.addf %33, %35 : vector<48x32xf32>
    %37 = math.tanh %36 : vector<48x32xf32>
    %38 = tpu.iota {dimensions = array<i32: 0>} : vector<48x32xi32>
    %c16_i32 = arith.constant 16 : i32
    %c0_i32 = arith.constant 0 : i32
    %39 = arith.cmpi eq, %c16_i32, %c0_i32 : i32
    %c1_i32 = arith.constant 1 : i32
    %40 = arith.select %39, %c1_i32, %c16_i32 : i32
    %41 = vector.broadcast %40 : i32 to vector<48x32xi32>
    %42 = arith.remsi %38, %41 : vector<48x32xi32>
    %c0_i32_29 = arith.constant 0 : i32
    %43 = vector.broadcast %c0_i32_29 : i32 to vector<48x32xi32>
    %44 = arith.cmpi ne, %42, %43 : vector<48x32xi32>
    %c0_i32_30 = arith.constant 0 : i32
    %45 = vector.broadcast %c0_i32_30 : i32 to vector<48x32xi32>
    %46 = arith.cmpi slt, %42, %45 : vector<48x32xi32>
    %c0_i32_31 = arith.constant 0 : i32
    %47 = arith.cmpi slt, %40, %c0_i32_31 : i32
    %48 = vector.broadcast %47 : i1 to vector<48x32xi1>
    %49 = vector.broadcast %48 : vector<48x32xi1> to vector<48x32xi1>
    %50 = arith.xori %46, %49 : vector<48x32xi1>
    %51 = arith.andi %50, %44 : vector<48x32xi1>
    %52 = vector.broadcast %40 : i32 to vector<48x32xi32>
    %53 = arith.addi %42, %52 : vector<48x32xi32>
    %54 = arith.select %51, %53, %42 : vector<48x32xi1>, vector<48x32xi32>
    %c13_i32 = arith.constant 13 : i32
    %55 = vector.broadcast %c13_i32 : i32 to vector<48x32xi32>
    %56 = arith.cmpi slt, %54, %55 : vector<48x32xi32>
    %cst_32 = arith.constant -2.000000e+00 : f32
    %57 = vector.broadcast %cst_32 : f32 to vector<48x32xf32>
    %58 = arith.select %56, %37, %57 : vector<48x32xi1>, vector<48x32xf32>
    %59 = vector.shape_cast %58 : vector<48x32xf32> to vector<3x16x32xf32>
    %cst_33 = arith.constant dense<0xFF800000> : vector<3x32xf32>
    %60 = vector.multi_reduction <maximumf>, %59, %cst_33 [1] : vector<3x16x32xf32> to vector<3x32xf32>
    %c0_34 = arith.constant 0 : index
    %c0_35 = arith.constant 0 : index
    %61 = vector.load %arg10[%c0_34, %c0_35] : memref<32x32xf32, #tpu.memory_space<vmem>>, vector<32x32xf32>
    %cst_36 = arith.constant dense<0.000000e+00> : vector<3x32xf32>
    %62 = tpu.matmul %60, %61, %cst_36 {dimension_numbers = #tpu.dot_dimension_numbers<[1], [1], [0], [0], [0, 0, 1, 0], [], []>} : vector<3x32xf32>, vector<32x32xf32>, vector<3x32xf32> -> vector<3x32xf32>
    %c0_37 = arith.constant 0 : index
    %c0_38 = arith.constant 0 : index
    %63 = vector.load %arg11[%c0_37, %c0_38] : memref<1x32xf32, #tpu.memory_space<vmem>>, vector<1x32xf32>
    %64 = vector.broadcast %63 : vector<1x32xf32> to vector<3x32xf32>
    %65 = arith.addf %62, %64 : vector<3x32xf32>
    %c0_39 = arith.constant 0 : index
    %c0_40 = arith.constant 0 : index
    %c0_41 = arith.constant 0 : index
    %66 = vector.load %arg13[%c0_39, %c0_40, %c0_41] : memref<1x3x32xf32, #tpu.memory_space<vmem>>, vector<1x3x32xf32>
    %67 = vector.shape_cast %66 : vector<1x3x32xf32> to vector<3x32xf32>
    %68 = vector.shape_cast %65 : vector<3x32xf32> to vector<1x3x32xf32>
    tpu.vector_store %arg13[%c0_39, %c0_40, %c0_41], %68 {strides = array<i32>} : memref<1x3x32xf32, #tpu.memory_space<vmem>>, vector<1x3x32xf32>,
    return
  }
  func.func @transform_0(%arg0: i32) -> (i32, i32, i32) {
    %c0_i32 = arith.constant 0 : i32
    %c0_i32_0 = arith.constant 0 : i32
    %c0_i32_1 = arith.constant 0 : i32
    return %arg0, %c0_i32, %c0_i32_0 : i32, i32, i32
  }
  func.func @transform_1(%arg0: i32) -> (i32, i32) {
    %c0_i32 = arith.constant 0 : i32
    %c0_i32_0 = arith.constant 0 : i32
    %c0_i32_1 = arith.constant 0 : i32
    return %c0_i32, %c0_i32_0 : i32, i32
  }
  func.func @transform_2(%arg0: i32) -> (i32, i32) {
    %c0_i32 = arith.constant 0 : i32
    %c0_i32_0 = arith.constant 0 : i32
    %c0_i32_1 = arith.constant 0 : i32
    return %c0_i32, %c0_i32_0 : i32, i32
  }
  func.func @transform_3(%arg0: i32) -> (i32, i32) {
    %c0_i32 = arith.constant 0 : i32
    %c0_i32_0 = arith.constant 0 : i32
    %c0_i32_1 = arith.constant 0 : i32
    return %c0_i32, %c0_i32_0 : i32, i32
  }
  func.func @transform_4(%arg0: i32) -> (i32, i32) {
    %c0_i32 = arith.constant 0 : i32
    %c0_i32_0 = arith.constant 0 : i32
    %c0_i32_1 = arith.constant 0 : i32
    return %c0_i32, %c0_i32_0 : i32, i32
  }
  func.func @transform_5(%arg0: i32) -> (i32, i32) {
    %c0_i32 = arith.constant 0 : i32
    %c0_i32_0 = arith.constant 0 : i32
    %c0_i32_1 = arith.constant 0 : i32
    return %c0_i32, %c0_i32_0 : i32, i32
  }
  func.func @transform_6(%arg0: i32) -> (i32, i32, i32) {
    %c0_i32 = arith.constant 0 : i32
    %c0_i32_0 = arith.constant 0 : i32
    %c0_i32_1 = arith.constant 0 : i32
    return %arg0, %c0_i32, %c0_i32_0 : i32, i32, i32
  }
  func.func @transform_7(%arg0: i32) -> (i32, i32) {
    %c0_i32 = arith.constant 0 : i32
    %c0_i32_0 = arith.constant 0 : i32
    %c0_i32_1 = arith.constant 0 : i32
    return %c0_i32, %c0_i32_0 : i32, i32
  }
  func.func @transform_8(%arg0: i32) -> (i32, i32) {
    %c0_i32 = arith.constant 0 : i32
    %c0_i32_0 = arith.constant 0 : i32
    %c0_i32_1 = arith.constant 0 : i32
    return %c0_i32, %c0_i32_0 : i32, i32
  }
  func.func @transform_9(%arg0: i32) -> (i32, i32) {
    %c0_i32 = arith.constant 0 : i32
    %c0_i32_0 = arith.constant 0 : i32
    %c0_i32_1 = arith.constant 0 : i32
    return %c0_i32, %c0_i32_0 : i32, i32
  }
  func.func @transform_10(%arg0: i32) -> (i32, i32) {
    %c0_i32 = arith.constant 0 : i32
    %c0_i32_0 = arith.constant 0 : i32
    %c0_i32_1 = arith.constant 0 : i32
    return %c0_i32, %c0_i32_0 : i32, i32
  }
  func.func @transform_11(%arg0: i32) -> (i32, i32, i32) {
    %c0_i32 = arith.constant 0 : i32
    %c0_i32_0 = arith.constant 0 : i32
    %c0_i32_1 = arith.constant 0 : i32
    return %arg0, %c0_i32, %c0_i32_0 : i32, i32, i32
  }
  func.func @transform_12(%arg0: i32) -> (i32, i32, i32) {
    %c0_i32 = arith.constant 0 : i32
    %c0_i32_0 = arith.constant 0 : i32
    %c0_i32_1 = arith.constant 0 : i32
    return %arg0, %c0_i32, %c0_i32_0 : i32, i32, i32
  }
}

</mosaic_0001>

<llo_original>
// kernel: tpu_custom_call.1
$region0: #{tpu_custom_call.1}
  #allocation0 [shape = 'u32[]', space=smem, size = 0x4, offset = 0x4, fixed_abs, tag = 'smem constant byte address 0x4 - core index']
  #allocation1 [shape = 'u32[144,128]{1,0:T(1,128)}', space=vmem, size = 0x12000, scoped, tag = 'internal scratch']
  %s0 = inlined_call_operand.vmem [shape: bf16[2,16,384], index: 0, kind: input, shape index: {}]
  %s1 = inlined_call_operand.vmem [shape: bf16[384,32], index: 1, kind: input, shape index: {}]
  %s2 = inlined_call_operand.vmem [shape: f32[1,32], index: 2, kind: input, shape index: {}]
  %s3 = inlined_call_operand.vmem [shape: f32[8,32], index: 3, kind: input, shape index: {}]
  %s4 = inlined_call_operand.vmem [shape: f32[8,32], index: 4, kind: input, shape index: {}]
  %s5 = inlined_call_operand.vmem [shape: f32[1,8], index: 5, kind: input, shape index: {}]
  %s6 = inlined_call_operand.vmem [shape: bf16[2,48,1024], index: 6, kind: input, shape index: {}]
  %s7 = inlined_call_operand.vmem [shape: bf16[1024,32], index: 7, kind: input, shape index: {}]
  %s8 = inlined_call_operand.vmem [shape: f32[1,32], index: 8, kind: input, shape index: {}]
  %s9 = inlined_call_operand.vmem [shape: f32[32,32], index: 9, kind: input, shape index: {}]
  %s10 = inlined_call_operand.vmem [shape: f32[1,32], index: 10, kind: input, shape index: {}]
  %s11 = inlined_call_operand.hbm [shape: f32[2,1,8], index: 11, kind: output, shape index: {0}]
  %s12 = inlined_call_operand.vmem [shape: f32[2,3,32], index: 12, kind: output, shape index: {1}]
  %13 = xla_tuple %s11, %s12
  %s14 = sld [smem:[#allocation0]]
  $region85: #{tpu_custom_call.1} parent=0
    _
  %s16 = ssub.s32 1, %s14
  %s17 = scalar_select 0, %s16, %s14
  $region1: #{tpu_custom_call.1} parent=0
    #allocation2 [shape = 'u8[1024]{0}', space=vmem, size = 0x400, scoped, tag = 'output window, operand 0']
    #allocation3 [shape = 's32[2]{0}', space=sflag, size = 0x8, scoped, tag = 'scoped memory for tpu_custom_call.1']
    %18 = vsyncpa [#allocation3], 0
    %s19 = scalar_lea.sflag [#allocation3], 1
    %20 = vsyncpa %s19, 0
    loop: start=0, step=1, limit=4
    $region2: #{tpu_custom_call.1} parent=1 // loop_pre_header
      _
    $region3: #{tpu_custom_call.1} parent=1 // loop_header
      %s22 = sphi 0, %s26
      %p23 = scmp.ge.s32.totalorder %s22, 4
      %s32 = sphi 0, %s34
      %s35 = sphi 0, %s32
      %s36 = sphi 0, %s35
      %s52 = sphi 0, %s36
      %s56 = sphi 0, %s56
      %s58 = sphi 0, %s56
      %s59 = sphi 0, %s58
      %s73 = sphi 0, %s59
      %s77 = sphi 0, %s77
      %s79 = sphi 0, %s77
      %s80 = sphi 0, %s79
      %s94 = sphi 0, %s80
      %s98 = sphi 0, %s98
      %s100 = sphi 0, %s98
      %s101 = sphi 0, %s100
      %s115 = sphi 0, %s101
      %s119 = sphi 0, %s119
      %s121 = sphi 0, %s119
      %s122 = sphi 0, %s121
      %s136 = sphi 0, %s122
      %s140 = sphi 0, %s140
      %s142 = sphi 0, %s140
      %s143 = sphi 0, %s142
      %s157 = sphi 0, %s143
      %s163 = sphi 0, %s165
      %s166 = sphi 0, %s163
      %s167 = sphi 0, %s166
      %s183 = sphi 0, %s167
      %s187 = sphi 0, %s187
      %s189 = sphi 0, %s187
      %s190 = sphi 0, %s189
      %s204 = sphi 0, %s190
      %s208 = sphi 0, %s208
      %s210 = sphi 0, %s208
      %s211 = sphi 0, %s210
      %s225 = sphi 0, %s211
      %s229 = sphi 0, %s229
      %s231 = sphi 0, %s229
      %s232 = sphi 0, %s231
      %s246 = sphi 0, %s232
      %s250 = sphi 0, %s250
      %s252 = sphi 0, %s250
      %s253 = sphi 0, %s252
      %s267 = sphi 0, %s253
      %s273 = sphi 0, %s275
      %s276 = sphi 0, %s273
      %s277 = sphi 0, %s276
      %s293 = sphi 0, %s277
      %s299 = sphi 0, %s301
      %s302 = sphi 0, %s299
      %s303 = sphi 0, %s302
      %s319 = sphi 0, %s303
    $region4: #{tpu_custom_call.1} parent=1 // loop_header_branch
      %25 = sbr.rel (%p23) target = $region8
    $region5: #{tpu_custom_call.1} parent=1 // loop_body
      %s27 = ssub.s32 %s22, 1
      %s28 = ssub.s32 %s22, 2
      %s29 = sadd.s32 %s22, 1
      %s30 = ssub.s32 %s22, %s29
      %p31 = scmp.eq.s32.totalorder %s30, 0
      %s33 = sadd.s32 %s32, 1
      %s34 = scalar_select %p31, %s32, %s33
      %p37 = pneg %p31
      %p38 = scmp.eq.s32.totalorder %s22, 1
      %p39 = por %p37, %p38
      %p40 = scmp.ne.s32.totalorder %s32, %s35
      %p41 = scmp.eq.s32.totalorder %s22, 0
      %p42 = por %p40, %p41
      %p43 = scmp.ne.s32.totalorder %s32, %s35
      %p44 = scmp.eq.s32.totalorder %s27, 1
      %p45 = por %p43, %p44
      %p46 = scmp.ne.s32.totalorder %s35, %s36
      %p47 = scmp.eq.s32.totalorder %s27, 0
      %p48 = por %p46, %p47
      %p49 = scmp.ne.s32.totalorder %s35, %s36
      %p50 = scmp.eq.s32.totalorder %s28, 1
      %p51 = por %p49, %p50
      %p53 = scmp.ne.s32.totalorder %s36, %s52
      %p54 = scmp.eq.s32.totalorder %s28, 0
      %p55 = por %p53, %p54
      %s57 = sadd.s32 %s56, 1
      %p60 = scmp.eq.s32.totalorder %s22, 1
      %p61 = scmp.ne.s32.totalorder %s56, %s58
      %p62 = scmp.eq.s32.totalorder %s22, 0
      %p63 = por %p61, %p62
      %p64 = scmp.ne.s32.totalorder %s56, %s58
      %p65 = scmp.eq.s32.totalorder %s27, 1
      %p66 = por %p64, %p65
      %p67 = scmp.ne.s32.totalorder %s58, %s59
      %p68 = scmp.eq.s32.totalorder %s27, 0
      %p69 = por %p67, %p68
      %p70 = scmp.ne.s32.totalorder %s58, %s59
      %p71 = scmp.eq.s32.totalorder %s28, 1
      %p72 = por %p70, %p71
      %p74 = scmp.ne.s32.totalorder %s59, %s73
      %p75 = scmp.eq.s32.totalorder %s28, 0
      %p76 = por %p74, %p75
      %s78 = sadd.s32 %s77, 1
      %p81 = scmp.eq.s32.totalorder %s22, 1
      %p82 = scmp.ne.s32.totalorder %s77, %s79
      %p83 = scmp.eq.s32.totalorder %s22, 0
      %p84 = por %p82, %p83
      %p85 = scmp.ne.s32.totalorder %s77, %s79
      %p86 = scmp.eq.s32.totalorder %s27, 1
      %p87 = por %p85, %p86
      %p88 = scmp.ne.s32.totalorder %s79, %s80
      %p89 = scmp.eq.s32.totalorder %s27, 0
      %p90 = por %p88, %p89
      %p91 = scmp.ne.s32.totalorder %s79, %s80
      %p92 = scmp.eq.s32.totalorder %s28, 1
      %p93 = por %p91, %p92
      %p95 = scmp.ne.s32.totalorder %s80, %s94
      %p96 = scmp.eq.s32.totalorder %s28, 0
      %p97 = por %p95, %p96
      %s99 = sadd.s32 %s98, 1
      %p102 = scmp.eq.s32.totalorder %s22, 1
      %p103 = scmp.ne.s32.totalorder %s98, %s100
      %p104 = scmp.eq.s32.totalorder %s22, 0
      %p105 = por %p103, %p104
      %p106 = scmp.ne.s32.totalorder %s98, %s100
      %p107 = scmp.eq.s32.totalorder %s27, 1
      %p108 = por %p106, %p107
      %p109 = scmp.ne.s32.totalorder %s100, %s101
      %p110 = scmp.eq.s32.totalorder %s27, 0
      %p111 = por %p109, %p110
      %p112 = scmp.ne.s32.totalorder %s100, %s101
      %p113 = scmp.eq.s32.totalorder %s28, 1
      %p114 = por %p112, %p113
      %p116 = scmp.ne.s32.totalorder %s101, %s115
      %p117 = scmp.eq.s32.totalorder %s28, 0
      %p118 = por %p116, %p117
      %s120 = sadd.s32 %s119, 1
      %p123 = scmp.eq.s32.totalorder %s22, 1
      %p124 = scmp.ne.s32.totalorder %s119, %s121
      %p125 = scmp.eq.s32.totalorder %s22, 0
      %p126 = por %p124, %p125
      %p127 = scmp.ne.s32.totalorder %s119, %s121
      %p128 = scmp.eq.s32.totalorder %s27, 1
      %p129 = por %p127, %p128
      %p130 = scmp.ne.s32.totalorder %s121, %s122
      %p131 = scmp.eq.s32.totalorder %s27, 0
      %p132 = por %p130, %p131
      %p133 = scmp.ne.s32.totalorder %s121, %s122
      %p134 = scmp.eq.s32.totalorder %s28, 1
      %p135 = por %p133, %p134
      %p137 = scmp.ne.s32.totalorder %s122, %s136
      %p138 = scmp.eq.s32.totalorder %s28, 0
      %p139 = por %p137, %p138
      %s141 = sadd.s32 %s140, 1
      %p144 = scmp.eq.s32.totalorder %s22, 1
      %p145 = scmp.ne.s32.totalorder %s140, %s142
      %p146 = scmp.eq.s32.totalorder %s22, 0
      %p147 = por %p145, %p146
      %p148 = scmp.ne.s32.totalorder %s140, %s142
      %p149 = scmp.eq.s32.totalorder %s27, 1
      %p150 = por %p148, %p149
      %p151 = scmp.ne.s32.totalorder %s142, %s143
      %p152 = scmp.eq.s32.totalorder %s27, 0
      %p153 = por %p151, %p152
      %p154 = scmp.ne.s32.totalorder %s142, %s143
      %p155 = scmp.eq.s32.totalorder %s28, 1
      %p156 = por %p154, %p155
      %p158 = scmp.ne.s32.totalorder %s143, %s157
      %p159 = scmp.eq.s32.totalorder %s28, 0
      %p160 = por %p158, %p159
      %s161 = ssub.s32 %s22, %s29
      %p162 = scmp.eq.s32.totalorder %s161, 0
      %s164 = sadd.s32 %s163, 1
      %s165 = scalar_select %p162, %s163, %s164
      %p168 = pneg %p162
      %p169 = scmp.eq.s32.totalorder %s22, 1
      %p170 = por %p168, %p169
      %p171 = scmp.ne.s32.totalorder %s163, %s166
      %p172 = scmp.eq.s32.totalorder %s22, 0
      %p173 = por %p171, %p172
      %p174 = scmp.ne.s32.totalorder %s163, %s166
      %p175 = scmp.eq.s32.totalorder %s27, 1
      %p176 = por %p174, %p175
      %p177 = scmp.ne.s32.totalorder %s166, %s167
      %p178 = scmp.eq.s32.totalorder %s27, 0
      %p179 = por %p177, %p178
      %p180 = scmp.ne.s32.totalorder %s166, %s167
      %p181 = scmp.eq.s32.totalorder %s28, 1
      %p182 = por %p180, %p181
      %p184 = scmp.ne.s32.totalorder %s167, %s183
      %p185 = scmp.eq.s32.totalorder %s28, 0
      %p186 = por %p184, %p185
      %s188 = sadd.s32 %s187, 1
      %p191 = scmp.eq.s32.totalorder %s22, 1
      %p192 = scmp.ne.s32.totalorder %s187, %s189
      %p193 = scmp.eq.s32.totalorder %s22, 0
      %p194 = por %p192, %p193
      %p195 = scmp.ne.s32.totalorder %s187, %s189
      %p196 = scmp.eq.s32.totalorder %s27, 1
      %p197 = por %p195, %p196
      %p198 = scmp.ne.s32.totalorder %s189, %s190
      %p199 = scmp.eq.s32.totalorder %s27, 0
      %p200 = por %p198, %p199
      %p201 = scmp.ne.s32.totalorder %s189, %s190
      %p202 = scmp.eq.s32.totalorder %s28, 1
      %p203 = por %p201, %p202
      %p205 = scmp.ne.s32.totalorder %s190, %s204
      %p206 = scmp.eq.s32.totalorder %s28, 0
      %p207 = por %p205, %p206
      %s209 = sadd.s32 %s208, 1
      %p212 = scmp.eq.s32.totalorder %s22, 1
      %p213 = scmp.ne.s32.totalorder %s208, %s210
      %p214 = scmp.eq.s32.totalorder %s22, 0
      %p215 = por %p213, %p214
      %p216 = scmp.ne.s32.totalorder %s208, %s210
      %p217 = scmp.eq.s32.totalorder %s27, 1
      %p218 = por %p216, %p217
      %p219 = scmp.ne.s32.totalorder %s210, %s211
      %p220 = scmp.eq.s32.totalorder %s27, 0
      %p221 = por %p219, %p220
      %p222 = scmp.ne.s32.totalorder %s210, %s211
      %p223 = scmp.eq.s32.totalorder %s28, 1
      %p224 = por %p222, %p223
      %p226 = scmp.ne.s32.totalorder %s211, %s225
      %p227 = scmp.eq.s32.totalorder %s28, 0
      %p228 = por %p226, %p227
      %s230 = sadd.s32 %s229, 1
      %p233 = scmp.eq.s32.totalorder %s22, 1
      %p234 = scmp.ne.s32.totalorder %s229, %s231
      %p235 = scmp.eq.s32.totalorder %s22, 0
      %p236 = por %p234, %p235
      %p237 = scmp.ne.s32.totalorder %s229, %s231
      %p238 = scmp.eq.s32.totalorder %s27, 1
      %p239 = por %p237, %p238
      %p240 = scmp.ne.s32.totalorder %s231, %s232
      %p241 = scmp.eq.s32.totalorder %s27, 0
      %p242 = por %p240, %p241
      %p243 = scmp.ne.s32.totalorder %s231, %s232
      %p244 = scmp.eq.s32.totalorder %s28, 1
      %p245 = por %p243, %p244
      %p247 = scmp.ne.s32.totalorder %s232, %s246
      %p248 = scmp.eq.s32.totalorder %s28, 0
      %p249 = por %p247, %p248
      %s251 = sadd.s32 %s250, 1
      %p254 = scmp.eq.s32.totalorder %s22, 1
      %p255 = scmp.ne.s32.totalorder %s250, %s252
      %p256 = scmp.eq.s32.totalorder %s22, 0
      %p257 = por %p255, %p256
      %p258 = scmp.ne.s32.totalorder %s250, %s252
      %p259 = scmp.eq.s32.totalorder %s27, 1
      %p260 = por %p258, %p259
      %p261 = scmp.ne.s32.totalorder %s252, %s253
      %p262 = scmp.eq.s32.totalorder %s27, 0
      %p263 = por %p261, %p262
      %p264 = scmp.ne.s32.totalorder %s252, %s253
      %p265 = scmp.eq.s32.totalorder %s28, 1
      %p266 = por %p264, %p265
      %p268 = scmp.ne.s32.totalorder %s253, %s267
      %p269 = scmp.eq.s32.totalorder %s28, 0
      %p270 = por %p268, %p269
      %s271 = ssub.s32 %s22, %s29
      %p272 = scmp.eq.s32.totalorder %s271, 0
      %s274 = sadd.s32 %s273, 1
      %s275 = scalar_select %p272, %s273, %s274
      %p278 = pneg %p272
      %p279 = scmp.eq.s32.totalorder %s22, 1
      %p280 = por %p278, %p279
      %p281 = scmp.ne.s32.totalorder %s273, %s276
      %p282 = scmp.eq.s32.totalorder %s22, 0
      %p283 = por %p281, %p282
      %p284 = scmp.ne.s32.totalorder %s273, %s276
      %p285 = scmp.eq.s32.totalorder %s27, 1
      %p286 = por %p284, %p285
      %p287 = scmp.ne.s32.totalorder %s276, %s277
      %p288 = scmp.eq.s32.totalorder %s27, 0
      %p289 = por %p287, %p288
      %p290 = scmp.ne.s32.totalorder %s276, %s277
      %p291 = scmp.eq.s32.totalorder %s28, 1
      %p292 = por %p290, %p291
      %p294 = scmp.ne.s32.totalorder %s277, %s293
      %p295 = scmp.eq.s32.totalorder %s28, 0
      %p296 = por %p294, %p295
      %s297 = ssub.s32 %s22, %s29
      %p298 = scmp.eq.s32.totalorder %s297, 0
      %s300 = sadd.s32 %s299, 1
      %s301 = scalar_select %p298, %s299, %s300
      %p304 = pneg %p298
      %p305 = scmp.eq.s32.totalorder %s22, 1
      %p306 = por %p304, %p305
      %p307 = scmp.ne.s32.totalorder %s299, %s302
      %p308 = scmp.eq.s32.totalorder %s22, 0
      %p309 = por %p307, %p308
      %p310 = scmp.ne.s32.totalorder %s299, %s302
      %p311 = scmp.eq.s32.totalorder %s27, 1
      %p312 = por %p310, %p311
      %p313 = scmp.ne.s32.totalorder %s302, %s303
      %p314 = scmp.eq.s32.totalorder %s27, 0
      %p315 = por %p313, %p314
      %p316 = scmp.ne.s32.totalorder %s302, %s303
      %p317 = scmp.eq.s32.totalorder %s28, 1
      %p318 = por %p316, %p317
      %p320 = scmp.ne.s32.totalorder %s303, %s319
      %p321 = scmp.eq.s32.totalorder %s28, 0
      %p322 = por %p320, %p321
      %p323 = scmp.le.s32.totalorder 1, %s22
      %p324 = scmp.lt.s32.totalorder %s22, 3
      %p325 = pnand %p323, %p324
      %p326 = pneg %p325
      // Predicated region
      $region9: #{tpu_custom_call.1} parent=5 // pred_check
        _
      $region10: #{tpu_custom_call.1} parent=5 // pred_check_branch
        %328 = sbr.rel (%p325) target = $region12
      $region11: #{tpu_custom_call.1} parent=5 // pred_region
        %s329 = ssub.s32 %s22, 1
        // Predicated region
        $region13: #{tpu_custom_call.1} parent=11 // pred_check
          %p330 = pneg %p69
        $region14: #{tpu_custom_call.1} parent=11 // pred_check_branch
          %332 = sbr.rel (%p330) target = $region16
        $region15: #{tpu_custom_call.1} parent=11 // pred_region
          _
        $region16: #{tpu_custom_call.1} parent=11 // pred_fallthru
          _
        // Predicated region
        $region17: #{tpu_custom_call.1} parent=11 // pred_check
          %p333 = pneg %p90
        $region18: #{tpu_custom_call.1} parent=11 // pred_check_branch
          %335 = sbr.rel (%p333) target = $region20
        $region19: #{tpu_custom_call.1} parent=11 // pred_region
          _
        $region20: #{tpu_custom_call.1} parent=11 // pred_fallthru
          _
        // Predicated region
        $region21: #{tpu_custom_call.1} parent=11 // pred_check
          %p336 = pneg %p111
        $region22: #{tpu_custom_call.1} parent=11 // pred_check_branch
          %338 = sbr.rel (%p336) target = $region24
        $region23: #{tpu_custom_call.1} parent=11 // pred_region
          _
        $region24: #{tpu_custom_call.1} parent=11 // pred_fallthru
          _
        // Predicated region
        $region25: #{tpu_custom_call.1} parent=11 // pred_check
          %p339 = pneg %p132
        $region26: #{tpu_custom_call.1} parent=11 // pred_check_branch
          %341 = sbr.rel (%p339) target = $region28
        $region27: #{tpu_custom_call.1} parent=11 // pred_region
          _
        $region28: #{tpu_custom_call.1} parent=11 // pred_fallthru
          _
        // Predicated region
        $region29: #{tpu_custom_call.1} parent=11 // pred_check
          %p342 = pneg %p153
        $region30: #{tpu_custom_call.1} parent=11 // pred_check_branch
          %344 = sbr.rel (%p342) target = $region32
        $region31: #{tpu_custom_call.1} parent=11 // pred_region
          _
        $region32: #{tpu_custom_call.1} parent=11 // pred_fallthru
          _
        // Predicated region
        $region33: #{tpu_custom_call.1} parent=11 // pred_check
          %p345 = pneg %p200
        $region34: #{tpu_custom_call.1} parent=11 // pred_check_branch
          %347 = sbr.rel (%p345) target = $region36
        $region35: #{tpu_custom_call.1} parent=11 // pred_region
          _
        $region36: #{tpu_custom_call.1} parent=11 // pred_fallthru
          _
        // Predicated region
        $region37: #{tpu_custom_call.1} parent=11 // pred_check
          %p348 = pneg %p221
        $region38: #{tpu_custom_call.1} parent=11 // pred_check_branch
          %350 = sbr.rel (%p348) target = $region40
        $region39: #{tpu_custom_call.1} parent=11 // pred_region
          _
        $region40: #{tpu_custom_call.1} parent=11 // pred_fallthru
          _
        // Predicated region
        $region41: #{tpu_custom_call.1} parent=11 // pred_check
          %p351 = pneg %p242
        $region42: #{tpu_custom_call.1} parent=11 // pred_check_branch
          %353 = sbr.rel (%p351) target = $region44
        $region43: #{tpu_custom_call.1} parent=11 // pred_region
          _
        $region44: #{tpu_custom_call.1} parent=11 // pred_fallthru
          _
        // Predicated region
        $region45: #{tpu_custom_call.1} parent=11 // pred_check
          %p354 = pneg %p263
        $region46: #{tpu_custom_call.1} parent=11 // pred_check_branch
          %356 = sbr.rel (%p354) target = $region48
        $region47: #{tpu_custom_call.1} parent=11 // pred_region
          _
        $region48: #{tpu_custom_call.1} parent=11 // pred_fallthru
          _
      $region12: #{tpu_custom_call.1} parent=5 // pred_fallthru
        _
      %p357 = scmp.lt.s32.totalorder %s22, 2
      // Predicated region
      $region49: #{tpu_custom_call.1} parent=5 // pred_check
        %p358 = pneg %p357
      $region50: #{tpu_custom_call.1} parent=5 // pred_check_branch
        %360 = sbr.rel (%p358) target = $region52
      $region51: #{tpu_custom_call.1} parent=5 // pred_region
        // Predicated region
        $region53: #{tpu_custom_call.1} parent=51 // pred_check
          %p361 = pneg %p42
        $region54: #{tpu_custom_call.1} parent=51 // pred_check_branch
          %363 = sbr.rel (%p361) target = $region56
        $region55: #{tpu_custom_call.1} parent=51 // pred_region
          %p364 = scmp.lt.s32.totalorder %s22, 1
          %s365 = scalar_select %p364, %s22, 1
          %s366 = smul.addr %s365, 6
          %s367 = smul.addr %s366, 4
          %s368 = scalar_lea.vmem %s0, %s367
        $region56: #{tpu_custom_call.1} parent=51 // pred_fallthru
          _
        // Predicated region
        $region57: #{tpu_custom_call.1} parent=51 // pred_check
          %p369 = pneg %p173
        $region58: #{tpu_custom_call.1} parent=51 // pred_check_branch
          %371 = sbr.rel (%p369) target = $region60
        $region59: #{tpu_custom_call.1} parent=51 // pred_region
          %p372 = scmp.lt.s32.totalorder %s22, 1
          %s373 = scalar_select %p372, %s22, 1
          %s374 = smul.addr %s373, 48
          %s375 = smul.addr %s374, 4
          %s376 = scalar_lea.vmem %s6, %s375
        $region60: #{tpu_custom_call.1} parent=51 // pred_fallthru
          _
      $region52: #{tpu_custom_call.1} parent=5 // pred_fallthru
        _
      %p377 = scmp.le.s32.totalorder 1, %s22
      %p378 = scmp.lt.s32.totalorder %s22, 3
      %p379 = pnand %p377, %p378
      %p380 = pneg %p379
      // Predicated region
      $region61: #{tpu_custom_call.1} parent=5 // pred_check
        _
      $region62: #{tpu_custom_call.1} parent=5 // pred_check_branch
        %382 = sbr.rel (%p379) target = $region64
      $region63: #{tpu_custom_call.1} parent=5 // pred_region
        %s383 = ssub.s32 %s22, 1
        %p384 = scmp.lt.s32.totalorder %s27, 1
        %s385 = scalar_select %p384, %s27, 1
        %s386 = smul.addr %s385, 6
        %s387 = smul.addr %s386, 4
        %s388 = scalar_lea.vmem %s0, %s387
        %p389 = pneg %p48
        %p390 = pneg %p45
        %p391 = pneg %p69
        %p392 = pneg %p66
        %p393 = pneg %p90
        %p394 = pneg %p87
        %p395 = pneg %p111
        %p396 = pneg %p108
        %p397 = pneg %p132
        %p398 = pneg %p129
        %p399 = pneg %p153
        %p400 = pneg %p150
        %p401 = scmp.lt.s32.totalorder %s27, 1
        %s402 = scalar_select %p401, %s27, 1
        %s403 = smul.addr %s402, 48
        %s404 = smul.addr %s403, 4
        %s405 = scalar_lea.vmem %s6, %s404
        %p406 = pneg %p179
        %p407 = pneg %p176
        %p408 = pneg %p200
        %p409 = pneg %p197
        %p410 = pneg %p221
        %p411 = pneg %p218
        %p412 = pneg %p242
        %p413 = pneg %p239
        %p414 = pneg %p263
        %p415 = pneg %p260
        %p416 = pneg %p289
        %p417 = pneg %p286
        %s418 = sand.u32 %s276, 1
        %s419 = scalar_lea.sflag [#allocation3], %s418
        %s420 = sand.u32 %s276, 1
        %s421 = scalar_lea.vmem [#allocation2], %s420
        %p422 = pneg %p315
        %p423 = pneg %p312
        %p424 = scmp.lt.s32.totalorder %s27, 1
        %s425 = scalar_select %p424, %s27, 1
        %s426 = smul.addr %s425, 4
        %s427 = scalar_lea.vmem %s12, %s426
        %p428 = scmp.lt.s32.totalorder %s27, 1
        %s429 = scalar_select %p428, %s27, 1
        %s430 = smul.addr %s429, 6
        %s431 = smul.addr %s430, 4
        %s432 = scalar_lea.vmem %s0, %s431
        %p433 = scmp.lt.s32.totalorder %s27, 1
        %s434 = scalar_select %p433, %s27, 1
        %s435 = smul.addr %s434, 48
        %s436 = smul.addr %s435, 4
        %s437 = scalar_lea.vmem %s6, %s436
        %p438 = scmp.lt.s32.totalorder %s27, 1
        %s439 = scalar_select %p438, %s27, 1
        %s440 = smul.addr %s439, 4
        %s441 = scalar_lea.vmem %s12, %s440
        %v443 = vld [vmem:[%s432] sm:$0xff]
        %v444 = vld [vmem:[%s432 + $0x8] sm:$0xf]
        %v445 = vld [vmem:[%s432 + $0xc] sm:$0xff]
        %v446 = vld [vmem:[%s432 + $0x14] sm:$0xf]
        %v447 = vld [vmem:[%s1] sm:$0xf]
        %v448 = vld [vmem:[%s1 + $0x4] sm:$0xf]
        %v449 = vld [vmem:[%s1 + $0x8] sm:$0xf]
        %v450 = vld [vmem:[%s1 + $0xc] sm:$0xf]
        %v451 = vld [vmem:[%s1 + $0x10] sm:$0xf]
        %v452 = vld [vmem:[%s1 + $0x14] sm:$0xf]
        %v453 = vld [vmem:[%s1 + $0x18] sm:$0xf]
        %v454 = vld [vmem:[%s1 + $0x1c] sm:$0xf]
        %v455 = vld [vmem:[%s1 + $0x20] sm:$0xf]
        %v456 = vld [vmem:[%s1 + $0x24] sm:$0xf]
        %v457 = vld [vmem:[%s1 + $0x28] sm:$0xf]
        %v458 = vld [vmem:[%s1 + $0x2c] sm:$0xf]
        %v459 = vld [vmem:[%s1 + $0x30] sm:$0xf]
        %v460 = vld [vmem:[%s1 + $0x34] sm:$0xf]
        %v461 = vld [vmem:[%s1 + $0x38] sm:$0xf]
        %v462 = vld [vmem:[%s1 + $0x3c] sm:$0xf]
        %v463 = vld [vmem:[%s1 + $0x40] sm:$0xf]
        %v464 = vld [vmem:[%s1 + $0x44] sm:$0xf]
        %v465 = vld [vmem:[%s1 + $0x48] sm:$0xf]
        %v466 = vld [vmem:[%s1 + $0x4c] sm:$0xf]
        %v467 = vld [vmem:[%s1 + $0x50] sm:$0xf]
        %v468 = vld [vmem:[%s1 + $0x54] sm:$0xf]
        %v469 = vld [vmem:[%s1 + $0x58] sm:$0xf]
        %v470 = vld [vmem:[%s1 + $0x5c] sm:$0xf]
        %v471 = vld [vmem:[%s1 + $0x60] sm:$0xf]
        %v472 = vld [vmem:[%s1 + $0x64] sm:$0xf]
        %v473 = vld [vmem:[%s1 + $0x68] sm:$0xf]
        %v474 = vld [vmem:[%s1 + $0x6c] sm:$0xf]
        %v475 = vld [vmem:[%s1 + $0x70] sm:$0xf]
        %v476 = vld [vmem:[%s1 + $0x74] sm:$0xf]
        %v477 = vld [vmem:[%s1 + $0x78] sm:$0xf]
        %v478 = vld [vmem:[%s1 + $0x7c] sm:$0xf]
        %v479 = vld [vmem:[%s1 + $0x80] sm:$0xf]
        %v480 = vld [vmem:[%s1 + $0x84] sm:$0xf]
        %v481 = vld [vmem:[%s1 + $0x88] sm:$0xf]
        %v482 = vld [vmem:[%s1 + $0x8c] sm:$0xf]
        %v483 = vld [vmem:[%s1 + $0x90] sm:$0xf]
        %v484 = vld [vmem:[%s1 + $0x94] sm:$0xf]
        %v485 = vld [vmem:[%s1 + $0x98] sm:$0xf]
        %v486 = vld [vmem:[%s1 + $0x9c] sm:$0xf]
        %v487 = vld [vmem:[%s1 + $0xa0] sm:$0xf]
        %v488 = vld [vmem:[%s1 + $0xa4] sm:$0xf]
        %v489 = vld [vmem:[%s1 + $0xa8] sm:$0xf]
        %v490 = vld [vmem:[%s1 + $0xac] sm:$0xf]
        %v491 = vld [vmem:[%s1 + $0xb0] sm:$0xf]
        %v492 = vld [vmem:[%s1 + $0xb4] sm:$0xf]
        %v493 = vld [vmem:[%s1 + $0xb8] sm:$0xf]
        %v494 = vld [vmem:[%s1 + $0xbc] sm:$0xf]
        %v495 = vld [vmem:[%s2] sm:$0x1]
        %v497 = vlaneseq
        %v498 = vshrl.u32 %v497, 7
        %v499 = vsub.s32 0, %v498
        %v500 = vrot.slane %v495, %v499
        %v506 = vunpack.c.l.b16 %v443
        %v507 = vunpack.c.h.b16 %v443
        %v508 = vunpack.c.l.b16 %v444
        %v509 = vunpack.c.l.b16 %v445
        %v510 = vunpack.c.h.b16 %v445
        %v511 = vunpack.c.l.b16 %v446
        %v512 = vpack.c.b16 %v509, %v506
        %v513 = vpack.c.b16 %v510, %v507
        %v514 = vpack.c.b16 %v511, %v508
        %v566 = vunpack.c.l.b16 %v447
        %v567 = vunpack.c.l.b16 %v448
        %v568 = vunpack.c.l.b16 %v449
        %v569 = vunpack.c.l.b16 %v450
        %v570 = vunpack.c.l.b16 %v451
        %v571 = vunpack.c.l.b16 %v452
        %v572 = vunpack.c.l.b16 %v453
        %v573 = vunpack.c.l.b16 %v454
        %v574 = vunpack.c.l.b16 %v455
        %v575 = vunpack.c.l.b16 %v456
        %v576 = vunpack.c.l.b16 %v457
        %v577 = vunpack.c.l.b16 %v458
        %v578 = vunpack.c.l.b16 %v459
        %v579 = vunpack.c.l.b16 %v460
        %v580 = vunpack.c.l.b16 %v461
        %v581 = vunpack.c.l.b16 %v462
        %v582 = vunpack.c.l.b16 %v463
        %v583 = vunpack.c.l.b16 %v464
        %v584 = vunpack.c.l.b16 %v465
        %v585 = vunpack.c.l.b16 %v466
        %v586 = vunpack.c.l.b16 %v467
        %v587 = vunpack.c.l.b16 %v468
        %v588 = vunpack.c.l.b16 %v469
        %v589 = vunpack.c.l.b16 %v470
        %v590 = vunpack.c.l.b16 %v471
        %v591 = vunpack.c.l.b16 %v472
        %v592 = vunpack.c.l.b16 %v473
        %v593 = vunpack.c.l.b16 %v474
        %v594 = vunpack.c.l.b16 %v475
        %v595 = vunpack.c.l.b16 %v476
        %v596 = vunpack.c.l.b16 %v477
        %v597 = vunpack.c.l.b16 %v478
        %v598 = vunpack.c.l.b16 %v479
        %v599 = vunpack.c.l.b16 %v480
        %v600 = vunpack.c.l.b16 %v481
        %v601 = vunpack.c.l.b16 %v482
        %v602 = vunpack.c.l.b16 %v483
        %v603 = vunpack.c.l.b16 %v484
        %v604 = vunpack.c.l.b16 %v485
        %v605 = vunpack.c.l.b16 %v486
        %v606 = vunpack.c.l.b16 %v487
        %v607 = vunpack.c.l.b16 %v488
        %v608 = vunpack.c.l.b16 %v489
        %v609 = vunpack.c.l.b16 %v490
        %v610 = vunpack.c.l.b16 %v491
        %v611 = vunpack.c.l.b16 %v492
        %v612 = vunpack.c.l.b16 %v493
        %v613 = vunpack.c.l.b16 %v494
        %v614 = vpack.c.b16 %v567, %v566
        %v615 = vpack.c.b16 %v569, %v568
        %v616 = vpack.c.b16 %v571, %v570
        %v617 = vpack.c.b16 %v573, %v572
        %v618 = vpack.c.b16 %v575, %v574
        %v619 = vpack.c.b16 %v577, %v576
        %v620 = vpack.c.b16 %v579, %v578
        %v621 = vpack.c.b16 %v581, %v580
        %v622 = vpack.c.b16 %v583, %v582
        %v623 = vpack.c.b16 %v585, %v584
        %v624 = vpack.c.b16 %v587, %v586
        %v625 = vpack.c.b16 %v589, %v588
        %v626 = vpack.c.b16 %v591, %v590
        %v627 = vpack.c.b16 %v593, %v592
        %v628 = vpack.c.b16 %v595, %v594
        %v629 = vpack.c.b16 %v597, %v596
        %v630 = vpack.c.b16 %v599, %v598
        %v631 = vpack.c.b16 %v601, %v600
        %v632 = vpack.c.b16 %v603, %v602
        %v633 = vpack.c.b16 %v605, %v604
        %v634 = vpack.c.b16 %v607, %v606
        %v635 = vpack.c.b16 %v609, %v608
        %v636 = vpack.c.b16 %v611, %v610
        %v637 = vpack.c.b16 %v613, %v612
        %662 = vmatprep.subr.bf16.mxu0 0
        %663 = vmatpush1.bf16.msra.mxu0 %v614
        %664 = vmatprep.subr.bf16.mxu0 0
        %665 = vmatpush1.bf16.msra.mxu0 %v615
        %666 = vmatprep.subr.bf16.mxu0 0
        %667 = vmatpush1.bf16.msra.mxu0 %v616
        %668 = vmatprep.subr.bf16.mxu0 0
        %669 = vmatpush1.bf16.msra.mxu0 %v617
        %670 = vmatprep.subr.bf16.mxu0 0
        %671 = vmatpush1.bf16.msra.mxu0 %v618
        %672 = vmatprep.subr.bf16.mxu0 0
        %673 = vmatpush1.bf16.msra.mxu0 %v619
        %674 = vmatprep.subr.bf16.mxu0 0
        %675 = vmatpush1.bf16.msra.mxu0 %v620
        %676 = vmatprep.subr.bf16.mxu0 0
        %677 = vmatpush1.bf16.msra.mxu0 %v621
        %678 = vmatprep.subr.bf16.mxu0 0
        %679 = vmatpush1.bf16.msra.mxu0 %v622
        %680 = vmatprep.subr.bf16.mxu0 0
        %681 = vmatpush1.bf16.msra.mxu0 %v623
        %682 = vmatprep.subr.bf16.mxu0 0
        %683 = vmatpush1.bf16.msra.mxu0 %v624
        %684 = vmatprep.subr.bf16.mxu0 0
        %685 = vmatpush1.bf16.msra.mxu0 %v625
        %686 = vmatprep.subr.bf16.mxu0 0
        %687 = vmatpush1.bf16.msra.mxu0 %v626
        %688 = vmatprep.subr.bf16.mxu0 0
        %689 = vmatpush1.bf16.msra.mxu0 %v627
        %690 = vmatprep.subr.bf16.mxu0 0
        %691 = vmatpush1.bf16.msra.mxu0 %v628
        %692 = vmatprep.subr.bf16.mxu0 0
        %693 = vmatpush1.bf16.msra.mxu0 %v629
        %694 = vmatprep.mubr.bf16.mxu0 %v513
        %695 = vmatmul.mubr.bf16.gmra.mrb[0].mxu0 %v512
        %v696 = vpop.f32.mrb[0].mxu0
        %v697 = vadd.f32 %v500, %v696
        %v698 = vpop.f32.mrb[0].mxu0
        %v699 = vpop.f32.mrb[0].mxu0
        %v700 = vadd.f32 %v500, %v699
        %v701 = vpop.f32.mrb[0].mxu0
        %702 = vdwg.mxu0
        %703 = vmatprep.subr.bf16.mxu0 0
        %704 = vmatpush1.bf16.msra.mxu0 %v630
        %705 = vmatprep.subr.bf16.mxu0 0
        %706 = vmatpush1.bf16.msra.mxu0 %v631
        %707 = vmatprep.subr.bf16.mxu0 0
        %708 = vmatpush1.bf16.msra.mxu0 %v632
        %709 = vmatprep.subr.bf16.mxu0 0
        %710 = vmatpush1.bf16.msra.mxu0 %v633
        %711 = vmatprep.subr.bf16.mxu0 0
        %712 = vmatpush1.bf16.msra.mxu0 %v634
        %713 = vmatprep.subr.bf16.mxu0 0
        %714 = vmatpush1.bf16.msra.mxu0 %v635
        %715 = vmatprep.subr.bf16.mxu0 0
        %716 = vmatpush1.bf16.msra.mxu0 %v636
        %717 = vmatprep.subr.bf16.mxu0 0
        %718 = vmatpush1.bf16.msra.mxu0 %v637
        %719 = vmatprep.subr.bf16.mxu0 0
        %720 = vmatpush1.bf16.msra.mxu0 0
        %721 = vmatprep.subr.bf16.mxu0 0
        %722 = vmatpush1.bf16.msra.mxu0 0
        %723 = vmatprep.subr.bf16.mxu0 0
        %724 = vmatpush1.bf16.msra.mxu0 0
        %725 = vmatprep.subr.bf16.mxu0 0
        %726 = vmatpush1.bf16.msra.mxu0 0
        %727 = vmatprep.subr.bf16.mxu0 0
        %728 = vmatpush1.bf16.msra.mxu0 0
        %729 = vmatprep.subr.bf16.mxu0 0
        %730 = vmatpush1.bf16.msra.mxu0 0
        %731 = vmatprep.subr.bf16.mxu0 0
        %732 = vmatpush1.bf16.msra.mxu0 0
        %733 = vmatprep.subr.bf16.mxu0 0
        %734 = vmatpush1.bf16.msra.mxu0 0
        %735 = vmatprep.mubr.bf16.mxu0 0
        %736 = vmatmul.mubr.bf16.gmra.mrb[0].mxu0 %v514
        %v737 = vpop.f32.mrb[0].mxu0
        %v738 = vadd.f32 %v697, %v737
        %v739 = vpop.f32.mrb[0].mxu0
        %v740 = vpop.f32.mrb[0].mxu0
        %v741 = vadd.f32 %v700, %v740
        %v742 = vpop.f32.mrb[0].mxu0
        %743 = vdwg.mxu0
        %v744 = vtanh.pop %v738
        %v745 = vtanh.pop %v741
        %v746 = vld [vmem:[%s3] sm:$0xff]
        %vm747 = vcmask 261120
        %v749 = vsel %vm747, %v746, 0
        %v752 = vsel %vm747, %v744, 0
        %v755 = vsel %vm747, %v745, 0
        %757 = vmatprep.subr.mxu0 0.0
        %758 = vmatpush1.xpose.msra.mxu0 %v752
        %759 = vmatprep.subr.mxu0 0.0
        %760 = vmatpush1.xpose.msra.mxu0 %v755
        %761 = vmatprep.subr.mxu0 0.0
        %762 = vmatpush1.xpose.msra.mxu0 0.0
        %763 = vmatprep.subr.mxu0 0.0
        %764 = vmatpush1.xpose.msra.mxu0 0.0
        %765 = vmatprep.subr.mxu0 0.0
        %766 = vmatpush1.xpose.msra.mxu0 0.0
        %767 = vmatprep.subr.mxu0 0.0
        %768 = vmatpush1.xpose.msra.mxu0 0.0
        %769 = vmatprep.subr.mxu0 0.0
        %770 = vmatpush1.xpose.msra.mxu0 0.0
        %771 = vmatprep.subr.mxu0 0.0
        %772 = vmatpush1.xpose.msra.mxu0 0.0
        %773 = vmatprep.subr.mxu0 0.0
        %774 = vmatpush1.xpose.msra.mxu0 0.0
        %775 = vmatprep.subr.mxu0 0.0
        %776 = vmatpush1.xpose.msra.mxu0 0.0
        %777 = vmatprep.subr.mxu0 0.0
        %778 = vmatpush1.xpose.msra.mxu0 0.0
        %779 = vmatprep.subr.mxu0 0.0
        %780 = vmatpush1.xpose.msra.mxu0 0.0
        %781 = vmatprep.subr.mxu0 0.0
        %782 = vmatpush1.xpose.msra.mxu0 0.0
        %783 = vmatprep.subr.mxu0 0.0
        %784 = vmatpush1.xpose.msra.mxu0 0.0
        %785 = vmatprep.subr.mxu0 0.0
        %786 = vmatpush1.xpose.msra.mxu0 0.0
        %787 = vmatprep.subr.mxu0 0.0
        %788 = vmatpush1.xpose.msra.mxu0 0.0
        %789 = vmatprep.subr.mxu0 0.0
        %790 = vmatpush1.xpose.msra.mxu0 0.0
        %791 = vmatprep.subr.mxu0 0.0
        %792 = vmatpush1.xpose.msra.mxu0 0.0
        %793 = vmatprep.subr.mxu0 0.0
        %794 = vmatpush1.xpose.msra.mxu0 0.0
        %795 = vmatprep.subr.mxu0 0.0
        %796 = vmatpush1.xpose.msra.mxu0 0.0
        %797 = vmatprep.subr.mxu0 0.0
        %798 = vmatpush1.xpose.msra.mxu0 0.0
        %799 = vmatprep.subr.mxu0 0.0
        %800 = vmatpush1.xpose.msra.mxu0 0.0
        %801 = vmatprep.subr.mxu0 0.0
        %802 = vmatpush1.xpose.msra.mxu0 0.0
        %803 = vmatprep.subr.mxu0 0.0
        %804 = vmatpush1.xpose.msra.mxu0 0.0
        %805 = vmatprep.subr.mxu0 0.0
        %806 = vmatpush1.xpose.msra.mxu0 0.0
        %807 = vmatprep.subr.mxu0 0.0
        %808 = vmatpush1.xpose.msra.mxu0 0.0
        %809 = vmatprep.subr.mxu0 0.0
        %810 = vmatpush1.xpose.msra.mxu0 0.0
        %811 = vmatprep.subr.mxu0 0.0
        %812 = vmatpush1.xpose.msra.mxu0 0.0
        %813 = vmatprep.subr.mxu0 0.0
        %814 = vmatpush1.xpose.msra.mxu0 0.0
        %815 = vmatprep.subr.mxu0 0.0
        %816 = vmatpush1.xpose.msra.mxu0 0.0
        %817 = vmatprep.subr.mxu0 0.0
        %818 = vmatpush1.xpose.msra.mxu0 0.0
        %819 = vmatprep.subr.mxu0 0.0
        %820 = vmatpush1.xpose.msra.mxu0 0.0
        %821 = vmatprep.mubr.f32.mxu0 0.0
        %822 = vmatmul.mubr.f32.gmra.mrb[0].mxu0 %v749
        %v823 = vpop.f32.mrb[0].mxu0
        %v824 = vadd.f32 0.0, %v823
        %v825 = vpop.f32.mrb[0].mxu0
        %826 = vdwg.mxu0
        %vm827 = vcmask 130048
        %v828 = vsel %vm827, %v824, -inf
        %829 = vmax.xlane.f32.xlu0 %v828
        %v830 = vpop.xlane.xlu0 %829
        %v831 = vsub.f32 %v824, %v830
        %v832 = vmul.f32 %v831, 1.442695
        %v833 = vpow.pop %v832
        %v834 = vsel %vm827, %v833, 0.0
        %835 = vadd.xlane.f32.xlu0 %v834
        %v836 = vpop.xlane.xlu0 %835
        %v837 = vrcp.pop %v836
        %v838 = vmul.f32 %v833, %v837
        %v840 = vsel %vm827, %v838, 0
        %842 = vmatprep.subr.mxu0 0.0
        %843 = vmatpush1.msra.mxu0 %v744
        %844 = vmatprep.subr.mxu0 0.0
        %845 = vmatpush1.msra.mxu0 %v745
        %846 = vmatprep.subr.mxu0 0.0
        %847 = vmatpush1.msra.mxu0 0.0
        %848 = vmatprep.subr.mxu0 0.0
        %849 = vmatpush1.msra.mxu0 0.0
        %850 = vmatprep.subr.mxu0 0.0
        %851 = vmatpush1.msra.mxu0 0.0
        %852 = vmatprep.subr.mxu0 0.0
        %853 = vmatpush1.msra.mxu0 0.0
        %854 = vmatprep.subr.mxu0 0.0
        %855 = vmatpush1.msra.mxu0 0.0
        %856 = vmatprep.subr.mxu0 0.0
        %857 = vmatpush1.msra.mxu0 0.0
        %858 = vmatprep.subr.mxu0 0.0
        %859 = vmatpush1.msra.mxu0 0.0
        %860 = vmatprep.subr.mxu0 0.0
        %861 = vmatpush1.msra.mxu0 0.0
        %862 = vmatprep.subr.mxu0 0.0
        %863 = vmatpush1.msra.mxu0 0.0
        %864 = vmatprep.subr.mxu0 0.0
        %865 = vmatpush1.msra.mxu0 0.0
        %866 = vmatprep.subr.mxu0 0.0
        %867 = vmatpush1.msra.mxu0 0.0
        %868 = vmatprep.subr.mxu0 0.0
        %869 = vmatpush1.msra.mxu0 0.0
        %870 = vmatprep.subr.mxu0 0.0
        %871 = vmatpush1.msra.mxu0 0.0
        %872 = vmatprep.subr.mxu0 0.0
        %873 = vmatpush1.msra.mxu0 0.0
        %874 = vmatprep.subr.mxu0 0.0
        %875 = vmatpush1.msra.mxu0 0.0
        %876 = vmatprep.subr.mxu0 0.0
        %877 = vmatpush1.msra.mxu0 0.0
        %878 = vmatprep.subr.mxu0 0.0
        %879 = vmatpush1.msra.mxu0 0.0
        %880 = vmatprep.subr.mxu0 0.0
        %881 = vmatpush1.msra.mxu0 0.0
        %882 = vmatprep.subr.mxu0 0.0
        %883 = vmatpush1.msra.mxu0 0.0
        %884 = vmatprep.subr.mxu0 0.0
        %885 = vmatpush1.msra.mxu0 0.0
        %886 = vmatprep.subr.mxu0 0.0
        %887 = vmatpush1.msra.mxu0 0.0
        %888 = vmatprep.subr.mxu0 0.0
        %889 = vmatpush1.msra.mxu0 0.0
        %890 = vmatprep.subr.mxu0 0.0
        %891 = vmatpush1.msra.mxu0 0.0
        %892 = vmatprep.subr.mxu0 0.0
        %893 = vmatpush1.msra.mxu0 0.0
        %894 = vmatprep.subr.mxu0 0.0
        %895 = vmatpush1.msra.mxu0 0.0
        %896 = vmatprep.subr.mxu0 0.0
        %897 = vmatpush1.msra.mxu0 0.0
        %898 = vmatprep.subr.mxu0 0.0
        %899 = vmatpush1.msra.mxu0 0.0
        %900 = vmatprep.subr.mxu0 0.0
        %901 = vmatpush1.msra.mxu0 0.0
        %902 = vmatprep.subr.mxu0 0.0
        %903 = vmatpush1.msra.mxu0 0.0
        %904 = vmatprep.subr.mxu0 0.0
        %905 = vmatpush1.msra.mxu0 0.0
        %906 = vmatprep.mubr.f32.mxu0 0.0
        %907 = vmatmul.mubr.f32.gmra.mrb[0].mxu0 %v840
        %v908 = vpop.f32.mrb[0].mxu0
        %v909 = vadd.f32 0.0, %v908
        %v910 = vpop.f32.mrb[0].mxu0
        %911 = vdwg.mxu0
        %v912 = vld [vmem:[%s4] sm:$0xff]
        %v913 = vmul.f32 %v912, %v909
        %v914 = vld [vmem:[%s5] sm:$0x1]
        %v916 = vsel %vm747, 1.0, 0
        %v919 = vsel %vm747, %v913, 0
        %921 = vmatprep.subr.mxu0 0.0
        %922 = vmatpush1.xpose.msra.mxu0 %v919
        %923 = vmatprep.subr.mxu0 0.0
        %924 = vmatpush1.xpose.msra.mxu0 0.0
        %925 = vmatprep.subr.mxu0 0.0
        %926 = vmatpush1.xpose.msra.mxu0 0.0
        %927 = vmatprep.subr.mxu0 0.0
        %928 = vmatpush1.xpose.msra.mxu0 0.0
        %929 = vmatprep.subr.mxu0 0.0
        %930 = vmatpush1.xpose.msra.mxu0 0.0
        %931 = vmatprep.subr.mxu0 0.0
        %932 = vmatpush1.xpose.msra.mxu0 0.0
        %933 = vmatprep.subr.mxu0 0.0
        %934 = vmatpush1.xpose.msra.mxu0 0.0
        %935 = vmatprep.subr.mxu0 0.0
        %936 = vmatpush1.xpose.msra.mxu0 0.0
        %937 = vmatprep.subr.mxu0 0.0
        %938 = vmatpush1.xpose.msra.mxu0 0.0
        %939 = vmatprep.subr.mxu0 0.0
        %940 = vmatpush1.xpose.msra.mxu0 0.0
        %941 = vmatprep.subr.mxu0 0.0
        %942 = vmatpush1.xpose.msra.mxu0 0.0
        %943 = vmatprep.subr.mxu0 0.0
        %944 = vmatpush1.xpose.msra.mxu0 0.0
        %945 = vmatprep.subr.mxu0 0.0
        %946 = vmatpush1.xpose.msra.mxu0 0.0
        %947 = vmatprep.subr.mxu0 0.0
        %948 = vmatpush1.xpose.msra.mxu0 0.0
        %949 = vmatprep.subr.mxu0 0.0
        %950 = vmatpush1.xpose.msra.mxu0 0.0
        %951 = vmatprep.subr.mxu0 0.0
        %952 = vmatpush1.xpose.msra.mxu0 0.0
        %953 = vmatprep.subr.mxu0 0.0
        %954 = vmatpush1.xpose.msra.mxu0 0.0
        %955 = vmatprep.subr.mxu0 0.0
        %956 = vmatpush1.xpose.msra.mxu0 0.0
        %957 = vmatprep.subr.mxu0 0.0
        %958 = vmatpush1.xpose.msra.mxu0 0.0
        %959 = vmatprep.subr.mxu0 0.0
        %960 = vmatpush1.xpose.msra.mxu0 0.0
        %961 = vmatprep.subr.mxu0 0.0
        %962 = vmatpush1.xpose.msra.mxu0 0.0
        %963 = vmatprep.subr.mxu0 0.0
        %964 = vmatpush1.xpose.msra.mxu0 0.0
        %965 = vmatprep.subr.mxu0 0.0
        %966 = vmatpush1.xpose.msra.mxu0 0.0
        %967 = vmatprep.subr.mxu0 0.0
        %968 = vmatpush1.xpose.msra.mxu0 0.0
        %969 = vmatprep.subr.mxu0 0.0
        %970 = vmatpush1.xpose.msra.mxu0 0.0
        %971 = vmatprep.subr.mxu0 0.0
        %972 = vmatpush1.xpose.msra.mxu0 0.0
        %973 = vmatprep.subr.mxu0 0.0
        %974 = vmatpush1.xpose.msra.mxu0 0.0
        %975 = vmatprep.subr.mxu0 0.0
        %976 = vmatpush1.xpose.msra.mxu0 0.0
        %977 = vmatprep.subr.mxu0 0.0
        %978 = vmatpush1.xpose.msra.mxu0 0.0
        %979 = vmatprep.subr.mxu0 0.0
        %980 = vmatpush1.xpose.msra.mxu0 0.0
        %981 = vmatprep.subr.mxu0 0.0
        %982 = vmatpush1.xpose.msra.mxu0 0.0
        %983 = vmatprep.subr.mxu0 0.0
        %984 = vmatpush1.xpose.msra.mxu0 0.0
        %985 = vmatprep.mubr.f32.mxu0 0.0
        %986 = vmatmul.mubr.f32.gmra.mrb[0].mxu0 %v916
        %v987 = vpop.f32.mrb[0].mxu0
        %v988 = vadd.f32 %v914, %v987
        %v989 = vpop.f32.mrb[0].mxu0
        %990 = vdwg.mxu0
        %vm991 = vcmask 57344
        %992 = vst.msk [vmem:[%s421] sm:$0x1] %vm991, %v988
        %v993 = vld [vmem:[%s437] sm:$0xff]
        %v994 = vld [vmem:[%s437 + $0x8] sm:$0xff]
        %v995 = vld [vmem:[%s437 + $0x10] sm:$0xff]
        %v996 = vld [vmem:[%s437 + $0x18] sm:$0xff]
        %v997 = vld [vmem:[%s437 + $0x20] sm:$0xff]
        %v998 = vld [vmem:[%s437 + $0x28] sm:$0xff]
        %v999 = vld [vmem:[%s437 + $0x30] sm:$0xff]
        %v1000 = vld [vmem:[%s437 + $0x38] sm:$0xff]
        %v1001 = vld [vmem:[%s437 + $0x40] sm:$0xff]
        %v1002 = vld [vmem:[%s437 + $0x48] sm:$0xff]
        %v1003 = vld [vmem:[%s437 + $0x50] sm:$0xff]
        %v1004 = vld [vmem:[%s437 + $0x58] sm:$0xff]
        %v1005 = vld [vmem:[%s437 + $0x60] sm:$0xff]
        %v1006 = vld [vmem:[%s437 + $0x68] sm:$0xff]
        %v1007 = vld [vmem:[%s437 + $0x70] sm:$0xff]
        %v1008 = vld [vmem:[%s437 + $0x78] sm:$0xff]
        %v1009 = vld [vmem:[%s437 + $0x80] sm:$0xff]
        %v1010 = vld [vmem:[%s437 + $0x88] sm:$0xff]
        %v1011 = vld [vmem:[%s437 + $0x90] sm:$0xff]
        %v1012 = vld [vmem:[%s437 + $0x98] sm:$0xff]
        %v1013 = vld [vmem:[%s437 + $0xa0] sm:$0xff]
        %v1014 = vld [vmem:[%s437 + $0xa8] sm:$0xff]
        %v1015 = vld [vmem:[%s437 + $0xb0] sm:$0xff]
        %v1016 = vld [vmem:[%s437 + $0xb8] sm:$0xff]
        %v1017 = vld [vmem:[%s7] sm:$0xf]
        %v1018 = vld [vmem:[%s7 + $0x4] sm:$0xf]
        %v1019 = vld [vmem:[%s7 + $0x8] sm:$0xf]
        %v1020 = vld [vmem:[%s7 + $0xc] sm:$0xf]
        %v1021 = vld [vmem:[%s7 + $0x10] sm:$0xf]
        %v1022 = vld [vmem:[%s7 + $0x14] sm:$0xf]
        %v1023 = vld [vmem:[%s7 + $0x18] sm:$0xf]
        %v1024 = vld [vmem:[%s7 + $0x1c] sm:$0xf]
        %v1025 = vld [vmem:[%s7 + $0x20] sm:$0xf]
        %v1026 = vld [vmem:[%s7 + $0x24] sm:$0xf]
        %v1027 = vld [vmem:[%s7 + $0x28] sm:$0xf]
        %v1028 = vld [vmem:[%s7 + $0x2c] sm:$0xf]
        %v1029 = vld [vmem:[%s7 + $0x30] sm:$0xf]
        %v1030 = vld [vmem:[%s7 + $0x34] sm:$0xf]
        %v1031 = vld [vmem:[%s7 + $0x38] sm:$0xf]
        %v1032 = vld [vmem:[%s7 + $0x3c] sm:$0xf]
        %v1033 = vld [vmem:[%s7 + $0x40] sm:$0xf]
        %v1034 = vld [vmem:[%s7 + $0x44] sm:$0xf]
        %v1035 = vld [vmem:[%s7 + $0x48] sm:$0xf]
        %v1036 = vld [vmem:[%s7 + $0x4c] sm:$0xf]
        %v1037 = vld [vmem:[%s7 + $0x50] sm:$0xf]
        %v1038 = vld [vmem:[%s7 + $0x54] sm:$0xf]
        %v1039 = vld [vmem:[%s7 + $0x58] sm:$0xf]
        %v1040 = vld [vmem:[%s7 + $0x5c] sm:$0xf]
        %v1041 = vld [vmem:[%s7 + $0x60] sm:$0xf]
        %v1042 = vld [vmem:[%s7 + $0x64] sm:$0xf]
        %v1043 = vld [vmem:[%s7 + $0x68] sm:$0xf]
        %v1044 = vld [vmem:[%s7 + $0x6c] sm:$0xf]
        %v1045 = vld [vmem:[%s7 + $0x70] sm:$0xf]
        %v1046 = vld [vmem:[%s7 + $0x74] sm:$0xf]
        %v1047 = vld [vmem:[%s7 + $0x78] sm:$0xf]
        %v1048 = vld [vmem:[%s7 + $0x7c] sm:$0xf]
        %v1049 = vld [vmem:[%s7 + $0x80] sm:$0xf]
        %v1050 = vld [vmem:[%s7 + $0x84] sm:$0xf]
        %v1051 = vld [vmem:[%s7 + $0x88] sm:$0xf]
        %v1052 = vld [vmem:[%s7 + $0x8c] sm:$0xf]
        %v1053 = vld [vmem:[%s7 + $0x90] sm:$0xf]
        %v1054 = vld [vmem:[%s7 + $0x94] sm:$0xf]
        %v1055 = vld [vmem:[%s7 + $0x98] sm:$0xf]
        %v1056 = vld [vmem:[%s7 + $0x9c] sm:$0xf]
        %v1057 = vld [vmem:[%s7 + $0xa0] sm:$0xf]
        %v1058 = vld [vmem:[%s7 + $0xa4] sm:$0xf]
        %v1059 = vld [vmem:[%s7 + $0xa8] sm:$0xf]
        %v1060 = vld [vmem:[%s7 + $0xac] sm:$0xf]
        %v1061 = vld [vmem:[%s7 + $0xb0] sm:$0xf]
        %v1062 = vld [vmem:[%s7 + $0xb4] sm:$0xf]
        %v1063 = vld [vmem:[%s7 + $0xb8] sm:$0xf]
        %v1064 = vld [vmem:[%s7 + $0xbc] sm:$0xf]
        %v1065 = vld [vmem:[%s7 + $0xc0] sm:$0xf]
        %v1066 = vld [vmem:[%s7 + $0xc4] sm:$0xf]
        %v1067 = vld [vmem:[%s7 + $0xc8] sm:$0xf]
        %v1068 = vld [vmem:[%s7 + $0xcc] sm:$0xf]
        %v1069 = vld [vmem:[%s7 + $0xd0] sm:$0xf]
        %v1070 = vld [vmem:[%s7 + $0xd4] sm:$0xf]
        %v1071 = vld [vmem:[%s7 + $0xd8] sm:$0xf]
        %v1072 = vld [vmem:[%s7 + $0xdc] sm:$0xf]
        %v1073 = vld [vmem:[%s7 + $0xe0] sm:$0xf]
        %v1074 = vld [vmem:[%s7 + $0xe4] sm:$0xf]
        %v1075 = vld [vmem:[%s7 + $0xe8] sm:$0xf]
        %v1076 = vld [vmem:[%s7 + $0xec] sm:$0xf]
        %v1077 = vld [vmem:[%s7 + $0xf0] sm:$0xf]
        %v1078 = vld [vmem:[%s7 + $0xf4] sm:$0xf]
        %v1079 = vld [vmem:[%s7 + $0xf8] sm:$0xf]
        %v1080 = vld [vmem:[%s7 + $0xfc] sm:$0xf]
        %v1081 = vld [vmem:[%s7 + $0x100] sm:$0xf]
        %v1082 = vld [vmem:[%s7 + $0x104] sm:$0xf]
        %v1083 = vld [vmem:[%s7 + $0x108] sm:$0xf]
        %v1084 = vld [vmem:[%s7 + $0x10c] sm:$0xf]
        %v1085 = vld [vmem:[%s7 + $0x110] sm:$0xf]
        %v1086 = vld [vmem:[%s7 + $0x114] sm:$0xf]
        %v1087 = vld [vmem:[%s7 + $0x118] sm:$0xf]
        %v1088 = vld [vmem:[%s7 + $0x11c] sm:$0xf]
        %v1089 = vld [vmem:[%s7 + $0x120] sm:$0xf]
        %v1090 = vld [vmem:[%s7 + $0x124] sm:$0xf]
        %v1091 = vld [vmem:[%s7 + $0x128] sm:$0xf]
        %v1092 = vld [vmem:[%s7 + $0x12c] sm:$0xf]
        %v1093 = vld [vmem:[%s7 + $0x130] sm:$0xf]
        %v1094 = vld [vmem:[%s7 + $0x134] sm:$0xf]
        %v1095 = vld [vmem:[%s7 + $0x138] sm:$0xf]
        %v1096 = vld [vmem:[%s7 + $0x13c] sm:$0xf]
        %v1097 = vld [vmem:[%s7 + $0x140] sm:$0xf]
        %v1098 = vld [vmem:[%s7 + $0x144] sm:$0xf]
        %v1099 = vld [vmem:[%s7 + $0x148] sm:$0xf]
        %v1100 = vld [vmem:[%s7 + $0x14c] sm:$0xf]
        %v1101 = vld [vmem:[%s7 + $0x150] sm:$0xf]
        %v1102 = vld [vmem:[%s7 + $0x154] sm:$0xf]
        %v1103 = vld [vmem:[%s7 + $0x158] sm:$0xf]
        %v1104 = vld [vmem:[%s7 + $0x15c] sm:$0xf]
        %v1105 = vld [vmem:[%s7 + $0x160] sm:$0xf]
        %v1106 = vld [vmem:[%s7 + $0x164] sm:$0xf]
        %v1107 = vld [vmem:[%s7 + $0x168] sm:$0xf]
        %v1108 = vld [vmem:[%s7 + $0x16c] sm:$0xf]
        %v1109 = vld [vmem:[%s7 + $0x170] sm:$0xf]
        %v1110 = vld [vmem:[%s7 + $0x174] sm:$0xf]
        %v1111 = vld [vmem:[%s7 + $0x178] sm:$0xf]
        %v1112 = vld [vmem:[%s7 + $0x17c] sm:$0xf]
        %v1113 = vld [vmem:[%s7 + $0x180] sm:$0xf]
        %v1114 = vld [vmem:[%s7 + $0x184] sm:$0xf]
        %v1115 = vld [vmem:[%s7 + $0x188] sm:$0xf]
        %v1116 = vld [vmem:[%s7 + $0x18c] sm:$0xf]
        %v1117 = vld [vmem:[%s7 + $0x190] sm:$0xf]
        %v1118 = vld [vmem:[%s7 + $0x194] sm:$0xf]
        %v1119 = vld [vmem:[%s7 + $0x198] sm:$0xf]
        %v1120 = vld [vmem:[%s7 + $0x19c] sm:$0xf]
        %v1121 = vld [vmem:[%s7 + $0x1a0] sm:$0xf]
        %v1122 = vld [vmem:[%s7 + $0x1a4] sm:$0xf]
        %v1123 = vld [vmem:[%s7 + $0x1a8] sm:$0xf]
        %v1124 = vld [vmem:[%s7 + $0x1ac] sm:$0xf]
        %v1125 = vld [vmem:[%s7 + $0x1b0] sm:$0xf]
        %v1126 = vld [vmem:[%s7 + $0x1b4] sm:$0xf]
        %v1127 = vld [vmem:[%s7 + $0x1b8] sm:$0xf]
        %v1128 = vld [vmem:[%s7 + $0x1bc] sm:$0xf]
        %v1129 = vld [vmem:[%s7 + $0x1c0] sm:$0xf]
        %v1130 = vld [vmem:[%s7 + $0x1c4] sm:$0xf]
        %v1131 = vld [vmem:[%s7 + $0x1c8] sm:$0xf]
        %v1132 = vld [vmem:[%s7 + $0x1cc] sm:$0xf]
        %v1133 = vld [vmem:[%s7 + $0x1d0] sm:$0xf]
        %v1134 = vld [vmem:[%s7 + $0x1d4] sm:$0xf]
        %v1135 = vld [vmem:[%s7 + $0x1d8] sm:$0xf]
        %v1136 = vld [vmem:[%s7 + $0x1dc] sm:$0xf]
        %v1137 = vld [vmem:[%s7 + $0x1e0] sm:$0xf]
        %v1138 = vld [vmem:[%s7 + $0x1e4] sm:$0xf]
        %v1139 = vld [vmem:[%s7 + $0x1e8] sm:$0xf]
        %v1140 = vld [vmem:[%s7 + $0x1ec] sm:$0xf]
        %v1141 = vld [vmem:[%s7 + $0x1f0] sm:$0xf]
        %v1142 = vld [vmem:[%s7 + $0x1f4] sm:$0xf]
        %v1143 = vld [vmem:[%s7 + $0x1f8] sm:$0xf]
        %v1144 = vld [vmem:[%s7 + $0x1fc] sm:$0xf]
        %v1145 = vld [vmem:[%s8] sm:$0x1]
        %v1147 = vlaneseq
        %v1148 = vshrl.u32 %v1147, 7
        %v1149 = vsub.s32 0, %v1148
        %v1150 = vrot.slane %v1145, %v1149
        %v1176 = vunpack.c.l.b16 %v993
        %v1177 = vunpack.c.h.b16 %v993
        %v1178 = vunpack.c.l.b16 %v994
        %v1179 = vunpack.c.h.b16 %v994
        %v1180 = vunpack.c.l.b16 %v995
        %v1181 = vunpack.c.h.b16 %v995
        %v1182 = vunpack.c.l.b16 %v996
        %v1183 = vunpack.c.h.b16 %v996
        %v1184 = vunpack.c.l.b16 %v997
        %v1185 = vunpack.c.h.b16 %v997
        %v1186 = vunpack.c.l.b16 %v998
        %v1187 = vunpack.c.h.b16 %v998
        %v1188 = vunpack.c.l.b16 %v999
        %v1189 = vunpack.c.h.b16 %v999
        %v1190 = vunpack.c.l.b16 %v1000
        %v1191 = vunpack.c.h.b16 %v1000
        %v1192 = vunpack.c.l.b16 %v1001
        %v1193 = vunpack.c.h.b16 %v1001
        %v1194 = vunpack.c.l.b16 %v1002
        %v1195 = vunpack.c.h.b16 %v1002
        %v1196 = vunpack.c.l.b16 %v1003
        %v1197 = vunpack.c.h.b16 %v1003
        %v1198 = vunpack.c.l.b16 %v1004
        %v1199 = vunpack.c.h.b16 %v1004
        %v1200 = vunpack.c.l.b16 %v1005
        %v1201 = vunpack.c.h.b16 %v1005
        %v1202 = vunpack.c.l.b16 %v1006
        %v1203 = vunpack.c.h.b16 %v1006
        %v1204 = vunpack.c.l.b16 %v1007
        %v1205 = vunpack.c.h.b16 %v1007
        %v1206 = vunpack.c.l.b16 %v1008
        %v1207 = vunpack.c.h.b16 %v1008
        %v1208 = vunpack.c.l.b16 %v1009
        %v1209 = vunpack.c.h.b16 %v1009
        %v1210 = vunpack.c.l.b16 %v1010
        %v1211 = vunpack.c.h.b16 %v1010
        %v1212 = vunpack.c.l.b16 %v1011
        %v1213 = vunpack.c.h.b16 %v1011
        %v1214 = vunpack.c.l.b16 %v1012
        %v1215 = vunpack.c.h.b16 %v1012
        %v1216 = vunpack.c.l.b16 %v1013
        %v1217 = vunpack.c.h.b16 %v1013
        %v1218 = vunpack.c.l.b16 %v1014
        %v1219 = vunpack.c.h.b16 %v1014
        %v1220 = vunpack.c.l.b16 %v1015
        %v1221 = vunpack.c.h.b16 %v1015
        %v1222 = vunpack.c.l.b16 %v1016
        %v1223 = vunpack.c.h.b16 %v1016
        %v1224 = vpack.c.b16 %v1184, %v1176
        %v1225 = vpack.c.b16 %v1185, %v1177
        %v1226 = vpack.c.b16 %v1186, %v1178
        %v1227 = vpack.c.b16 %v1187, %v1179
        %v1228 = vpack.c.b16 %v1188, %v1180
        %v1229 = vpack.c.b16 %v1189, %v1181
        %v1230 = vpack.c.b16 %v1190, %v1182
        %v1231 = vpack.c.b16 %v1191, %v1183
        %v1232 = vpack.c.b16 %v1200, %v1192
        %v1233 = vpack.c.b16 %v1201, %v1193
        %v1234 = vpack.c.b16 %v1202, %v1194
        %v1235 = vpack.c.b16 %v1203, %v1195
        %v1236 = vpack.c.b16 %v1204, %v1196
        %v1237 = vpack.c.b16 %v1205, %v1197
        %v1238 = vpack.c.b16 %v1206, %v1198
        %v1239 = vpack.c.b16 %v1207, %v1199
        %v1240 = vpack.c.b16 %v1216, %v1208
        %v1241 = vpack.c.b16 %v1217, %v1209
        %v1242 = vpack.c.b16 %v1218, %v1210
        %v1243 = vpack.c.b16 %v1219, %v1211
        %v1244 = vpack.c.b16 %v1220, %v1212
        %v1245 = vpack.c.b16 %v1221, %v1213
        %v1246 = vpack.c.b16 %v1222, %v1214
        %v1247 = vpack.c.b16 %v1223, %v1215
        %v1400 = vunpack.c.l.b16 %v1017
        %v1401 = vunpack.c.l.b16 %v1018
        %v1402 = vunpack.c.l.b16 %v1019
        %v1403 = vunpack.c.l.b16 %v1020
        %v1404 = vunpack.c.l.b16 %v1021
        %v1405 = vunpack.c.l.b16 %v1022
        %v1406 = vunpack.c.l.b16 %v1023
        %v1407 = vunpack.c.l.b16 %v1024
        %v1408 = vunpack.c.l.b16 %v1025
        %v1409 = vunpack.c.l.b16 %v1026
        %v1410 = vunpack.c.l.b16 %v1027
        %v1411 = vunpack.c.l.b16 %v1028
        %v1412 = vunpack.c.l.b16 %v1029
        %v1413 = vunpack.c.l.b16 %v1030
        %v1414 = vunpack.c.l.b16 %v1031
        %v1415 = vunpack.c.l.b16 %v1032
        %v1416 = vunpack.c.l.b16 %v1033
        %v1417 = vunpack.c.l.b16 %v1034
        %v1418 = vunpack.c.l.b16 %v1035
        %v1419 = vunpack.c.l.b16 %v1036
        %v1420 = vunpack.c.l.b16 %v1037
        %v1421 = vunpack.c.l.b16 %v1038
        %v1422 = vunpack.c.l.b16 %v1039
        %v1423 = vunpack.c.l.b16 %v1040
        %v1424 = vunpack.c.l.b16 %v1041
        %v1425 = vunpack.c.l.b16 %v1042
        %v1426 = vunpack.c.l.b16 %v1043
        %v1427 = vunpack.c.l.b16 %v1044
        %v1428 = vunpack.c.l.b16 %v1045
        %v1429 = vunpack.c.l.b16 %v1046
        %v1430 = vunpack.c.l.b16 %v1047
        %v1431 = vunpack.c.l.b16 %v1048
        %v1432 = vunpack.c.l.b16 %v1049
        %v1433 = vunpack.c.l.b16 %v1050
        %v1434 = vunpack.c.l.b16 %v1051
        %v1435 = vunpack.c.l.b16 %v1052
        %v1436 = vunpack.c.l.b16 %v1053
        %v1437 = vunpack.c.l.b16 %v1054
        %v1438 = vunpack.c.l.b16 %v1055
        %v1439 = vunpack.c.l.b16 %v1056
        %v1440 = vunpack.c.l.b16 %v1057
        %v1441 = vunpack.c.l.b16 %v1058
        %v1442 = vunpack.c.l.b16 %v1059
        %v1443 = vunpack.c.l.b16 %v1060
        %v1444 = vunpack.c.l.b16 %v1061
        %v1445 = vunpack.c.l.b16 %v1062
        %v1446 = vunpack.c.l.b16 %v1063
        %v1447 = vunpack.c.l.b16 %v1064
        %v1448 = vunpack.c.l.b16 %v1065
        %v1449 = vunpack.c.l.b16 %v1066
        %v1450 = vunpack.c.l.b16 %v1067
        %v1451 = vunpack.c.l.b16 %v1068
        %v1452 = vunpack.c.l.b16 %v1069
        %v1453 = vunpack.c.l.b16 %v1070
        %v1454 = vunpack.c.l.b16 %v1071
        %v1455 = vunpack.c.l.b16 %v1072
        %v1456 = vunpack.c.l.b16 %v1073
        %v1457 = vunpack.c.l.b16 %v1074
        %v1458 = vunpack.c.l.b16 %v1075
        %v1459 = vunpack.c.l.b16 %v1076
        %v1460 = vunpack.c.l.b16 %v1077
        %v1461 = vunpack.c.l.b16 %v1078
        %v1462 = vunpack.c.l.b16 %v1079
        %v1463 = vunpack.c.l.b16 %v1080
        %v1464 = vunpack.c.l.b16 %v1081
        %v1465 = vunpack.c.l.b16 %v1082
        %v1466 = vunpack.c.l.b16 %v1083
        %v1467 = vunpack.c.l.b16 %v1084
        %v1468 = vunpack.c.l.b16 %v1085
        %v1469 = vunpack.c.l.b16 %v1086
        %v1470 = vunpack.c.l.b16 %v1087
        %v1471 = vunpack.c.l.b16 %v1088
        %v1472 = vunpack.c.l.b16 %v1089
        %v1473 = vunpack.c.l.b16 %v1090
        %v1474 = vunpack.c.l.b16 %v1091
        %v1475 = vunpack.c.l.b16 %v1092
        %v1476 = vunpack.c.l.b16 %v1093
        %v1477 = vunpack.c.l.b16 %v1094
        %v1478 = vunpack.c.l.b16 %v1095
        %v1479 = vunpack.c.l.b16 %v1096
        %v1480 = vunpack.c.l.b16 %v1097
        %v1481 = vunpack.c.l.b16 %v1098
        %v1482 = vunpack.c.l.b16 %v1099
        %v1483 = vunpack.c.l.b16 %v1100
        %v1484 = vunpack.c.l.b16 %v1101
        %v1485 = vunpack.c.l.b16 %v1102
        %v1486 = vunpack.c.l.b16 %v1103
        %v1487 = vunpack.c.l.b16 %v1104
        %v1488 = vunpack.c.l.b16 %v1105
        %v1489 = vunpack.c.l.b16 %v1106
        %v1490 = vunpack.c.l.b16 %v1107
        %v1491 = vunpack.c.l.b16 %v1108
        %v1492 = vunpack.c.l.b16 %v1109
        %v1493 = vunpack.c.l.b16 %v1110
        %v1494 = vunpack.c.l.b16 %v1111
        %v1495 = vunpack.c.l.b16 %v1112
        %v1496 = vunpack.c.l.b16 %v1113
        %v1497 = vunpack.c.l.b16 %v1114
        %v1498 = vunpack.c.l.b16 %v1115
        %v1499 = vunpack.c.l.b16 %v1116
        %v1500 = vunpack.c.l.b16 %v1117
        %v1501 = vunpack.c.l.b16 %v1118
        %v1502 = vunpack.c.l.b16 %v1119
        %v1503 = vunpack.c.l.b16 %v1120
        %v1504 = vunpack.c.l.b16 %v1121
        %v1505 = vunpack.c.l.b16 %v1122
        %v1506 = vunpack.c.l.b16 %v1123
        %v1507 = vunpack.c.l.b16 %v1124
        %v1508 = vunpack.c.l.b16 %v1125
        %v1509 = vunpack.c.l.b16 %v1126
        %v1510 = vunpack.c.l.b16 %v1127
        %v1511 = vunpack.c.l.b16 %v1128
        %v1512 = vunpack.c.l.b16 %v1129
        %v1513 = vunpack.c.l.b16 %v1130
        %v1514 = vunpack.c.l.b16 %v1131
        %v1515 = vunpack.c.l.b16 %v1132
        %v1516 = vunpack.c.l.b16 %v1133
        %v1517 = vunpack.c.l.b16 %v1134
        %v1518 = vunpack.c.l.b16 %v1135
        %v1519 = vunpack.c.l.b16 %v1136
        %v1520 = vunpack.c.l.b16 %v1137
        %v1521 = vunpack.c.l.b16 %v1138
        %v1522 = vunpack.c.l.b16 %v1139
        %v1523 = vunpack.c.l.b16 %v1140
        %v1524 = vunpack.c.l.b16 %v1141
        %v1525 = vunpack.c.l.b16 %v1142
        %v1526 = vunpack.c.l.b16 %v1143
        %v1527 = vunpack.c.l.b16 %v1144
        %v1528 = vpack.c.b16 %v1401, %v1400
        %v1529 = vpack.c.b16 %v1403, %v1402
        %v1530 = vpack.c.b16 %v1405, %v1404
        %v1531 = vpack.c.b16 %v1407, %v1406
        %v1532 = vpack.c.b16 %v1409, %v1408
        %v1533 = vpack.c.b16 %v1411, %v1410
        %v1534 = vpack.c.b16 %v1413, %v1412
        %v1535 = vpack.c.b16 %v1415, %v1414
        %v1536 = vpack.c.b16 %v1417, %v1416
        %v1537 = vpack.c.b16 %v1419, %v1418
        %v1538 = vpack.c.b16 %v1421, %v1420
        %v1539 = vpack.c.b16 %v1423, %v1422
        %v1540 = vpack.c.b16 %v1425, %v1424
        %v1541 = vpack.c.b16 %v1427, %v1426
        %v1542 = vpack.c.b16 %v1429, %v1428
        %v1543 = vpack.c.b16 %v1431, %v1430
        %v1544 = vpack.c.b16 %v1433, %v1432
        %v1545 = vpack.c.b16 %v1435, %v1434
        %v1546 = vpack.c.b16 %v1437, %v1436
        %v1547 = vpack.c.b16 %v1439, %v1438
        %v1548 = vpack.c.b16 %v1441, %v1440
        %v1549 = vpack.c.b16 %v1443, %v1442
        %v1550 = vpack.c.b16 %v1445, %v1444
        %v1551 = vpack.c.b16 %v1447, %v1446
        %v1552 = vpack.c.b16 %v1449, %v1448
        %v1553 = vpack.c.b16 %v1451, %v1450
        %v1554 = vpack.c.b16 %v1453, %v1452
        %v1555 = vpack.c.b16 %v1455, %v1454
        %v1556 = vpack.c.b16 %v1457, %v1456
        %v1557 = vpack.c.b16 %v1459, %v1458
        %v1558 = vpack.c.b16 %v1461, %v1460
        %v1559 = vpack.c.b16 %v1463, %v1462
        %v1560 = vpack.c.b16 %v1465, %v1464
        %v1561 = vpack.c.b16 %v1467, %v1466
        %v1562 = vpack.c.b16 %v1469, %v1468
        %v1563 = vpack.c.b16 %v1471, %v1470
        %v1564 = vpack.c.b16 %v1473, %v1472
        %v1565 = vpack.c.b16 %v1475, %v1474
        %v1566 = vpack.c.b16 %v1477, %v1476
        %v1567 = vpack.c.b16 %v1479, %v1478
        %v1568 = vpack.c.b16 %v1481, %v1480
        %v1569 = vpack.c.b16 %v1483, %v1482
        %v1570 = vpack.c.b16 %v1485, %v1484
        %v1571 = vpack.c.b16 %v1487, %v1486
        %v1572 = vpack.c.b16 %v1489, %v1488
        %v1573 = vpack.c.b16 %v1491, %v1490
        %v1574 = vpack.c.b16 %v1493, %v1492
        %v1575 = vpack.c.b16 %v1495, %v1494
        %v1576 = vpack.c.b16 %v1497, %v1496
        %v1577 = vpack.c.b16 %v1499, %v1498
        %v1578 = vpack.c.b16 %v1501, %v1500
        %v1579 = vpack.c.b16 %v1503, %v1502
        %v1580 = vpack.c.b16 %v1505, %v1504
        %v1581 = vpack.c.b16 %v1507, %v1506
        %v1582 = vpack.c.b16 %v1509, %v1508
        %v1583 = vpack.c.b16 %v1511, %v1510
        %v1584 = vpack.c.b16 %v1513, %v1512
        %v1585 = vpack.c.b16 %v1515, %v1514
        %v1586 = vpack.c.b16 %v1517, %v1516
        %v1587 = vpack.c.b16 %v1519, %v1518
        %v1588 = vpack.c.b16 %v1521, %v1520
        %v1589 = vpack.c.b16 %v1523, %v1522
        %v1590 = vpack.c.b16 %v1525, %v1524
        %v1591 = vpack.c.b16 %v1527, %v1526
        %1656 = vmatprep.subr.bf16.mxu0 0
        %1657 = vmatpush1.bf16.msra.mxu0 %v1528
        %1658 = vmatprep.subr.bf16.mxu0 0
        %1659 = vmatpush1.bf16.msra.mxu0 %v1529
        %1660 = vmatprep.subr.bf16.mxu0 0
        %1661 = vmatpush1.bf16.msra.mxu0 %v1530
        %1662 = vmatprep.subr.bf16.mxu0 0
        %1663 = vmatpush1.bf16.msra.mxu0 %v1531
        %1664 = vmatprep.subr.bf16.mxu0 0
        %1665 = vmatpush1.bf16.msra.mxu0 %v1532
        %1666 = vmatprep.subr.bf16.mxu0 0
        %1667 = vmatpush1.bf16.msra.mxu0 %v1533
        %1668 = vmatprep.subr.bf16.mxu0 0
        %1669 = vmatpush1.bf16.msra.mxu0 %v1534
        %1670 = vmatprep.subr.bf16.mxu0 0
        %1671 = vmatpush1.bf16.msra.mxu0 %v1535
        %1672 = vmatprep.subr.bf16.mxu0 0
        %1673 = vmatpush1.bf16.msra.mxu0 %v1536
        %1674 = vmatprep.subr.bf16.mxu0 0
        %1675 = vmatpush1.bf16.msra.mxu0 %v1537
        %1676 = vmatprep.subr.bf16.mxu0 0
        %1677 = vmatpush1.bf16.msra.mxu0 %v1538
        %1678 = vmatprep.subr.bf16.mxu0 0
        %1679 = vmatpush1.bf16.msra.mxu0 %v1539
        %1680 = vmatprep.subr.bf16.mxu0 0
        %1681 = vmatpush1.bf16.msra.mxu0 %v1540
        %1682 = vmatprep.subr.bf16.mxu0 0
        %1683 = vmatpush1.bf16.msra.mxu0 %v1541
        %1684 = vmatprep.subr.bf16.mxu0 0
        %1685 = vmatpush1.bf16.msra.mxu0 %v1542
        %1686 = vmatprep.subr.bf16.mxu0 0
        %1687 = vmatpush1.bf16.msra.mxu0 %v1543
        %1688 = vmatprep.mubr.bf16.mxu0 %v1225
        %1689 = vmatmul.mubr.bf16.gmra.mrb[0].mxu0 %v1224
        %v1690 = vpop.f32.mrb[0].mxu0
        %v1691 = vadd.f32 %v1150, %v1690
        %v1692 = vpop.f32.mrb[0].mxu0
        %v1693 = vpop.f32.mrb[0].mxu0
        %v1694 = vadd.f32 %v1150, %v1693
        %v1695 = vpop.f32.mrb[0].mxu0
        %1696 = vmatprep.mubr.bf16.mxu0 %v1233
        %1697 = vmatmul.mubr.bf16.gmra.mrb[0].mxu0 %v1232
        %v1698 = vpop.f32.mrb[0].mxu0
        %v1699 = vadd.f32 %v1150, %v1698
        %v1700 = vpop.f32.mrb[0].mxu0
        %v1701 = vpop.f32.mrb[0].mxu0
        %v1702 = vadd.f32 %v1150, %v1701
        %v1703 = vpop.f32.mrb[0].mxu0
        %1704 = vmatprep.mubr.bf16.mxu0 %v1241
        %1705 = vmatmul.mubr.bf16.gmra.mrb[0].mxu0 %v1240
        %v1706 = vpop.f32.mrb[0].mxu0
        %v1707 = vadd.f32 %v1150, %v1706
        %v1708 = vpop.f32.mrb[0].mxu0
        %v1709 = vpop.f32.mrb[0].mxu0
        %v1710 = vadd.f32 %v1150, %v1709
        %v1711 = vpop.f32.mrb[0].mxu0
        %1712 = vdwg.mxu0
        %1713 = vmatprep.subr.bf16.mxu0 0
        %1714 = vmatpush1.bf16.msra.mxu0 %v1544
        %1715 = vmatprep.subr.bf16.mxu0 0
        %1716 = vmatpush1.bf16.msra.mxu0 %v1545
        %1717 = vmatprep.subr.bf16.mxu0 0
        %1718 = vmatpush1.bf16.msra.mxu0 %v1546
        %1719 = vmatprep.subr.bf16.mxu0 0
        %1720 = vmatpush1.bf16.msra.mxu0 %v1547
        %1721 = vmatprep.subr.bf16.mxu0 0
        %1722 = vmatpush1.bf16.msra.mxu0 %v1548
        %1723 = vmatprep.subr.bf16.mxu0 0
        %1724 = vmatpush1.bf16.msra.mxu0 %v1549
        %1725 = vmatprep.subr.bf16.mxu0 0
        %1726 = vmatpush1.bf16.msra.mxu0 %v1550
        %1727 = vmatprep.subr.bf16.mxu0 0
        %1728 = vmatpush1.bf16.msra.mxu0 %v1551
        %1729 = vmatprep.subr.bf16.mxu0 0
        %1730 = vmatpush1.bf16.msra.mxu0 %v1552
        %1731 = vmatprep.subr.bf16.mxu0 0
        %1732 = vmatpush1.bf16.msra.mxu0 %v1553
        %1733 = vmatprep.subr.bf16.mxu0 0
        %1734 = vmatpush1.bf16.msra.mxu0 %v1554
        %1735 = vmatprep.subr.bf16.mxu0 0
        %1736 = vmatpush1.bf16.msra.mxu0 %v1555
        %1737 = vmatprep.subr.bf16.mxu0 0
        %1738 = vmatpush1.bf16.msra.mxu0 %v1556
        %1739 = vmatprep.subr.bf16.mxu0 0
        %1740 = vmatpush1.bf16.msra.mxu0 %v1557
        %1741 = vmatprep.subr.bf16.mxu0 0
        %1742 = vmatpush1.bf16.msra.mxu0 %v1558
        %1743 = vmatprep.subr.bf16.mxu0 0
        %1744 = vmatpush1.bf16.msra.mxu0 %v1559
        %1745 = vmatprep.mubr.bf16.mxu0 %v1227
        %1746 = vmatmul.mubr.bf16.gmra.mrb[0].mxu0 %v1226
        %v1747 = vpop.f32.mrb[0].mxu0
        %v1748 = vadd.f32 %v1691, %v1747
        %v1749 = vpop.f32.mrb[0].mxu0
        %v1750 = vpop.f32.mrb[0].mxu0
        %v1751 = vadd.f32 %v1694, %v1750
        %v1752 = vpop.f32.mrb[0].mxu0
        %1753 = vmatprep.mubr.bf16.mxu0 %v1235
        %1754 = vmatmul.mubr.bf16.gmra.mrb[0].mxu0 %v1234
        %v1755 = vpop.f32.mrb[0].mxu0
        %v1756 = vadd.f32 %v1699, %v1755
        %v1757 = vpop.f32.mrb[0].mxu0
        %v1758 = vpop.f32.mrb[0].mxu0
        %v1759 = vadd.f32 %v1702, %v1758
        %v1760 = vpop.f32.mrb[0].mxu0
        %1761 = vmatprep.mubr.bf16.mxu0 %v1243
        %1762 = vmatmul.mubr.bf16.gmra.mrb[0].mxu0 %v1242
        %v1763 = vpop.f32.mrb[0].mxu0
        %v1764 = vadd.f32 %v1707, %v1763
        %v1765 = vpop.f32.mrb[0].mxu0
        %v1766 = vpop.f32.mrb[0].mxu0
        %v1767 = vadd.f32 %v1710, %v1766
        %v1768 = vpop.f32.mrb[0].mxu0
        %1769 = vdwg.mxu0
        %1770 = vmatprep.subr.bf16.mxu0 0
        %1771 = vmatpush1.bf16.msra.mxu0 %v1560
        %1772 = vmatprep.subr.bf16.mxu0 0
        %1773 = vmatpush1.bf16.msra.mxu0 %v1561
        %1774 = vmatprep.subr.bf16.mxu0 0
        %1775 = vmatpush1.bf16.msra.mxu0 %v1562
        %1776 = vmatprep.subr.bf16.mxu0 0
        %1777 = vmatpush1.bf16.msra.mxu0 %v1563
        %1778 = vmatprep.subr.bf16.mxu0 0
        %1779 = vmatpush1.bf16.msra.mxu0 %v1564
        %1780 = vmatprep.subr.bf16.mxu0 0
        %1781 = vmatpush1.bf16.msra.mxu0 %v1565
        %1782 = vmatprep.subr.bf16.mxu0 0
        %1783 = vmatpush1.bf16.msra.mxu0 %v1566
        %1784 = vmatprep.subr.bf16.mxu0 0
        %1785 = vmatpush1.bf16.msra.mxu0 %v1567
        %1786 = vmatprep.subr.bf16.mxu0 0
        %1787 = vmatpush1.bf16.msra.mxu0 %v1568
        %1788 = vmatprep.subr.bf16.mxu0 0
        %1789 = vmatpush1.bf16.msra.mxu0 %v1569
        %1790 = vmatprep.subr.bf16.mxu0 0
        %1791 = vmatpush1.bf16.msra.mxu0 %v1570
        %1792 = vmatprep.subr.bf16.mxu0 0
        %1793 = vmatpush1.bf16.msra.mxu0 %v1571
        %1794 = vmatprep.subr.bf16.mxu0 0
        %1795 = vmatpush1.bf16.msra.mxu0 %v1572
        %1796 = vmatprep.subr.bf16.mxu0 0
        %1797 = vmatpush1.bf16.msra.mxu0 %v1573
        %1798 = vmatprep.subr.bf16.mxu0 0
        %1799 = vmatpush1.bf16.msra.mxu0 %v1574
        %1800 = vmatprep.subr.bf16.mxu0 0
        %1801 = vmatpush1.bf16.msra.mxu0 %v1575
        %1802 = vmatprep.mubr.bf16.mxu0 %v1229
        %1803 = vmatmul.mubr.bf16.gmra.mrb[0].mxu0 %v1228
        %v1804 = vpop.f32.mrb[0].mxu0
        %v1805 = vadd.f32 %v1748, %v1804
        %v1806 = vpop.f32.mrb[0].mxu0
        %v1807 = vpop.f32.mrb[0].mxu0
        %v1808 = vadd.f32 %v1751, %v1807
        %v1809 = vpop.f32.mrb[0].mxu0
        %1810 = vmatprep.mubr.bf16.mxu0 %v1237
        %1811 = vmatmul.mubr.bf16.gmra.mrb[0].mxu0 %v1236
        %v1812 = vpop.f32.mrb[0].mxu0
        %v1813 = vadd.f32 %v1756, %v1812
        %v1814 = vpop.f32.mrb[0].mxu0
        %v1815 = vpop.f32.mrb[0].mxu0
        %v1816 = vadd.f32 %v1759, %v1815
        %v1817 = vpop.f32.mrb[0].mxu0
        %1818 = vmatprep.mubr.bf16.mxu0 %v1245
        %1819 = vmatmul.mubr.bf16.gmra.mrb[0].mxu0 %v1244
        %v1820 = vpop.f32.mrb[0].mxu0
        %v1821 = vadd.f32 %v1764, %v1820
        %v1822 = vpop.f32.mrb[0].mxu0
        %v1823 = vpop.f32.mrb[0].mxu0
        %v1824 = vadd.f32 %v1767, %v1823
        %v1825 = vpop.f32.mrb[0].mxu0
        %1826 = vdwg.mxu0
        %1827 = vmatprep.subr.bf16.mxu0 0
        %1828 = vmatpush1.bf16.msra.mxu0 %v1576
        %1829 = vmatprep.subr.bf16.mxu0 0
        %1830 = vmatpush1.bf16.msra.mxu0 %v1577
        %1831 = vmatprep.subr.bf16.mxu0 0
        %1832 = vmatpush1.bf16.msra.mxu0 %v1578
        %1833 = vmatprep.subr.bf16.mxu0 0
        %1834 = vmatpush1.bf16.msra.mxu0 %v1579
        %1835 = vmatprep.subr.bf16.mxu0 0
        %1836 = vmatpush1.bf16.msra.mxu0 %v1580
        %1837 = vmatprep.subr.bf16.mxu0 0
        %1838 = vmatpush1.bf16.msra.mxu0 %v1581
        %1839 = vmatprep.subr.bf16.mxu0 0
        %1840 = vmatpush1.bf16.msra.mxu0 %v1582
        %1841 = vmatprep.subr.bf16.mxu0 0
        %1842 = vmatpush1.bf16.msra.mxu0 %v1583
        %1843 = vmatprep.subr.bf16.mxu0 0
        %1844 = vmatpush1.bf16.msra.mxu0 %v1584
        %1845 = vmatprep.subr.bf16.mxu0 0
        %1846 = vmatpush1.bf16.msra.mxu0 %v1585
        %1847 = vmatprep.subr.bf16.mxu0 0
        %1848 = vmatpush1.bf16.msra.mxu0 %v1586
        %1849 = vmatprep.subr.bf16.mxu0 0
        %1850 = vmatpush1.bf16.msra.mxu0 %v1587
        %1851 = vmatprep.subr.bf16.mxu0 0
        %1852 = vmatpush1.bf16.msra.mxu0 %v1588
        %1853 = vmatprep.subr.bf16.mxu0 0
        %1854 = vmatpush1.bf16.msra.mxu0 %v1589
        %1855 = vmatprep.subr.bf16.mxu0 0
        %1856 = vmatpush1.bf16.msra.mxu0 %v1590
        %1857 = vmatprep.subr.bf16.mxu0 0
        %1858 = vmatpush1.bf16.msra.mxu0 %v1591
        %1859 = vmatprep.mubr.bf16.mxu0 %v1231
        %1860 = vmatmul.mubr.bf16.gmra.mrb[0].mxu0 %v1230
        %v1861 = vpop.f32.mrb[0].mxu0
        %v1862 = vadd.f32 %v1805, %v1861
        %v1863 = vpop.f32.mrb[0].mxu0
        %v1864 = vpop.f32.mrb[0].mxu0
        %v1865 = vadd.f32 %v1808, %v1864
        %v1866 = vpop.f32.mrb[0].mxu0
        %1867 = vmatprep.mubr.bf16.mxu0 %v1239
        %1868 = vmatmul.mubr.bf16.gmra.mrb[0].mxu0 %v1238
        %v1869 = vpop.f32.mrb[0].mxu0
        %v1870 = vadd.f32 %v1813, %v1869
        %v1871 = vpop.f32.mrb[0].mxu0
        %v1872 = vpop.f32.mrb[0].mxu0
        %v1873 = vadd.f32 %v1816, %v1872
        %v1874 = vpop.f32.mrb[0].mxu0
        %1875 = vmatprep.mubr.bf16.mxu0 %v1247
        %1876 = vmatmul.mubr.bf16.gmra.mrb[0].mxu0 %v1246
        %v1877 = vpop.f32.mrb[0].mxu0
        %v1878 = vadd.f32 %v1821, %v1877
        %v1879 = vpop.f32.mrb[0].mxu0
        %v1880 = vpop.f32.mrb[0].mxu0
        %v1881 = vadd.f32 %v1824, %v1880
        %v1882 = vpop.f32.mrb[0].mxu0
        %1883 = vdwg.mxu0
        %v1884 = vtanh.pop %v1862
        %v1885 = vtanh.pop %v1865
        %v1886 = vtanh.pop %v1870
        %v1887 = vtanh.pop %v1873
        %v1888 = vtanh.pop %v1878
        %v1889 = vtanh.pop %v1881
        %v1890 = vlaneseq
        %v1891 = vshrl.u32 %v1890, 7
        %v1892 = vadd.s32 %v1891, 8
        %v1893 = vadd.s32 %v1891, 16
        %v1894 = vadd.s32 %v1891, 24
        %v1895 = vadd.s32 %v1891, 32
        %v1896 = vadd.s32 %v1891, 40
        %vm1897 = vcmp.lt.s32.totalorder %v1891, 0
        %v1898 = vsub.s32 0, %v1891
        %v1899 = vsel %vm1897, %v1898, %v1891
        %v1900 = vshrl.u32 %v1899, 4
        %v1901 = vand.u32 %v1899, 15
        %v1902 = vsub.s32 0, %v1901
        %v1903 = vsel %vm1897, %v1902, %v1901
        %vm1904 = vcmp.lt.s32.totalorder %v1892, 0
        %v1905 = vsub.s32 0, %v1892
        %v1906 = vsel %vm1904, %v1905, %v1892
        %v1907 = vshrl.u32 %v1906, 4
        %v1908 = vand.u32 %v1906, 15
        %v1909 = vsub.s32 0, %v1908
        %v1910 = vsel %vm1904, %v1909, %v1908
        %vm1911 = vcmp.lt.s32.totalorder %v1893, 0
        %v1912 = vsub.s32 0, %v1893
        %v1913 = vsel %vm1911, %v1912, %v1893
        %v1914 = vshrl.u32 %v1913, 4
        %v1915 = vand.u32 %v1913, 15
        %v1916 = vsub.s32 0, %v1915
        %v1917 = vsel %vm1911, %v1916, %v1915
        %vm1918 = vcmp.lt.s32.totalorder %v1894, 0
        %v1919 = vsub.s32 0, %v1894
        %v1920 = vsel %vm1918, %v1919, %v1894
        %v1921 = vshrl.u32 %v1920, 4
        %v1922 = vand.u32 %v1920, 15
        %v1923 = vsub.s32 0, %v1922
        %v1924 = vsel %vm1918, %v1923, %v1922
        %vm1925 = vcmp.lt.s32.totalorder %v1895, 0
        %v1926 = vsub.s32 0, %v1895
        %v1927 = vsel %vm1925, %v1926, %v1895
        %v1928 = vshrl.u32 %v1927, 4
        %v1929 = vand.u32 %v1927, 15
        %v1930 = vsub.s32 0, %v1929
        %v1931 = vsel %vm1925, %v1930, %v1929
        %vm1932 = vcmp.lt.s32.totalorder %v1896, 0
        %v1933 = vsub.s32 0, %v1896
        %v1934 = vsel %vm1932, %v1933, %v1896
        %v1935 = vshrl.u32 %v1934, 4
        %v1936 = vand.u32 %v1934, 15
        %v1937 = vsub.s32 0, %v1936
        %v1938 = vsel %vm1932, %v1937, %v1936
        %vm1939 = vcmp.ne.s32.totalorder %v1903, 0
        %vm1940 = vcmp.ne.s32.totalorder %v1910, 0
        %vm1941 = vcmp.ne.s32.totalorder %v1917, 0
        %vm1942 = vcmp.ne.s32.totalorder %v1924, 0
        %vm1943 = vcmp.ne.s32.totalorder %v1931, 0
        %vm1944 = vcmp.ne.s32.totalorder %v1938, 0
        %vm1945 = vcmp.lt.s32.totalorder %v1903, 0
        %vm1946 = vcmp.lt.s32.totalorder %v1910, 0
        %vm1947 = vcmp.lt.s32.totalorder %v1917, 0
        %vm1948 = vcmp.lt.s32.totalorder %v1924, 0
        %vm1949 = vcmp.lt.s32.totalorder %v1931, 0
        %vm1950 = vcmp.lt.s32.totalorder %v1938, 0
        %vm1951 = vmand %vm1945, %vm1939
        %vm1952 = vmand %vm1946, %vm1940
        %vm1953 = vmand %vm1947, %vm1941
        %vm1954 = vmand %vm1948, %vm1942
        %vm1955 = vmand %vm1949, %vm1943
        %vm1956 = vmand %vm1950, %vm1944
        %v1957 = vadd.s32 %v1903, 16
        %v1958 = vadd.s32 %v1910, 16
        %v1959 = vadd.s32 %v1917, 16
        %v1960 = vadd.s32 %v1924, 16
        %v1961 = vadd.s32 %v1931, 16
        %v1962 = vadd.s32 %v1938, 16
        %v1963 = vsel %vm1951, %v1957, %v1903
        %v1964 = vsel %vm1952, %v1958, %v1910
        %v1965 = vsel %vm1953, %v1959, %v1917
        %v1966 = vsel %vm1954, %v1960, %v1924
        %v1967 = vsel %vm1955, %v1961, %v1931
        %v1968 = vsel %vm1956, %v1962, %v1938
        %vm1969 = vcmp.lt.s32.totalorder %v1963, 13
        %vm1970 = vcmp.lt.s32.totalorder %v1964, 13
        %vm1971 = vcmp.lt.s32.totalorder %v1965, 13
        %vm1972 = vcmp.lt.s32.totalorder %v1966, 13
        %vm1973 = vcmp.lt.s32.totalorder %v1967, 13
        %vm1974 = vcmp.lt.s32.totalorder %v1968, 13
        %v1975 = vsel %vm1969, %v1884, -2.0
        %v1976 = vsel %vm1970, %v1885, -2.0
        %v1977 = vsel %vm1971, %v1886, -2.0
        %v1978 = vsel %vm1972, %v1887, -2.0
        %v1979 = vsel %vm1973, %v1888, -2.0
        %v1980 = vsel %vm1974, %v1889, -2.0
        %v1981 = vsel %vm747, %v1975, -inf
        %v1982 = vsel %vm747, %v1976, -inf
        %v1983 = vmax.f32 %v1981, %v1982
        %v1984 = vrot.slane %v1983, 4
        %v1985 = vmax.f32 %v1983, %v1984
        %v1986 = vrot.slane %v1985, 2
        %v1987 = vmax.f32 %v1985, %v1986
        %v1988 = vrot.slane %v1987, 1
        %v1989 = vmax.f32 %v1987, %v1988
        %v1990 = vsel %vm747, %v1977, -inf
        %v1991 = vsel %vm747, %v1978, -inf
        %v1992 = vmax.f32 %v1990, %v1991
        %v1993 = vrot.slane %v1992, 4
        %v1994 = vmax.f32 %v1992, %v1993
        %v1995 = vrot.slane %v1994, 2
        %v1996 = vmax.f32 %v1994, %v1995
        %v1997 = vrot.slane %v1996, 1
        %v1998 = vmax.f32 %v1996, %v1997
        %v1999 = vsel %vm747, %v1979, -inf
        %v2000 = vsel %vm747, %v1980, -inf
        %v2001 = vmax.f32 %v1999, %v2000
        %v2002 = vrot.slane %v2001, 4
        %v2003 = vmax.f32 %v2001, %v2002
        %v2004 = vrot.slane %v2003, 2
        %v2005 = vmax.f32 %v2003, %v2004
        %v2006 = vrot.slane %v2005, 1
        %v2007 = vmax.f32 %v2005, %v2006
        %v2008 = vld [vmem:[%s9] sm:$0xff]
        %v2009 = vld [vmem:[%s9 + $0x8] sm:$0xff]
        %v2010 = vld [vmem:[%s9 + $0x10] sm:$0xff]
        %v2011 = vld [vmem:[%s9 + $0x18] sm:$0xff]
        %v2012 = vld [vmem:[%s10] sm:$0x1]
        %v2014 = vlaneseq
        %v2015 = vshrl.u32 %v2014, 7
        %v2016 = vsub.s32 0, %v2015
        %v2017 = vrot.slane %v2012, %v2016
        %vm2022 = vcmask 1041409
        %v2023 = vsel %vm2022, %v1998, %v1989
        %vm2024 = vcmask 1042434
        %v2025 = vsel %vm2024, %v2007, %v2023
        %v2026 = vsel %vm747, %v2025, 0
        %v2029 = vsel %vm747, %v2008, 0
        %v2032 = vsel %vm747, %v2009, 0
        %v2035 = vsel %vm747, %v2010, 0
        %v2038 = vsel %vm747, %v2011, 0
        %2040 = vmatprep.subr.mxu0 0.0
        %2041 = vmatpush1.xpose.msra.mxu0 %v2029
        %2042 = vmatprep.subr.mxu0 0.0
        %2043 = vmatpush1.xpose.msra.mxu0 %v2032
        %2044 = vmatprep.subr.mxu0 0.0
        %2045 = vmatpush1.xpose.msra.mxu0 %v2035
        %2046 = vmatprep.subr.mxu0 0.0
        %2047 = vmatpush1.xpose.msra.mxu0 %v2038
        %2048 = vmatprep.subr.mxu0 0.0
        %2049 = vmatpush1.xpose.msra.mxu0 0.0
        %2050 = vmatprep.subr.mxu0 0.0
        %2051 = vmatpush1.xpose.msra.mxu0 0.0
        %2052 = vmatprep.subr.mxu0 0.0
        %2053 = vmatpush1.xpose.msra.mxu0 0.0
        %2054 = vmatprep.subr.mxu0 0.0
        %2055 = vmatpush1.xpose.msra.mxu0 0.0
        %2056 = vmatprep.subr.mxu0 0.0
        %2057 = vmatpush1.xpose.msra.mxu0 0.0
        %2058 = vmatprep.subr.mxu0 0.0
        %2059 = vmatpush1.xpose.msra.mxu0 0.0
        %2060 = vmatprep.subr.mxu0 0.0
        %2061 = vmatpush1.xpose.msra.mxu0 0.0
        %2062 = vmatprep.subr.mxu0 0.0
        %2063 = vmatpush1.xpose.msra.mxu0 0.0
        %2064 = vmatprep.subr.mxu0 0.0
        %2065 = vmatpush1.xpose.msra.mxu0 0.0
        %2066 = vmatprep.subr.mxu0 0.0
        %2067 = vmatpush1.xpose.msra.mxu0 0.0
        %2068 = vmatprep.subr.mxu0 0.0
        %2069 = vmatpush1.xpose.msra.mxu0 0.0
        %2070 = vmatprep.subr.mxu0 0.0
        %2071 = vmatpush1.xpose.msra.mxu0 0.0
        %2072 = vmatprep.subr.mxu0 0.0
        %2073 = vmatpush1.xpose.msra.mxu0 0.0
        %2074 = vmatprep.subr.mxu0 0.0
        %2075 = vmatpush1.xpose.msra.mxu0 0.0
        %2076 = vmatprep.subr.mxu0 0.0
        %2077 = vmatpush1.xpose.msra.mxu0 0.0
        %2078 = vmatprep.subr.mxu0 0.0
        %2079 = vmatpush1.xpose.msra.mxu0 0.0
        %2080 = vmatprep.subr.mxu0 0.0
        %2081 = vmatpush1.xpose.msra.mxu0 0.0
        %2082 = vmatprep.subr.mxu0 0.0
        %2083 = vmatpush1.xpose.msra.mxu0 0.0
        %2084 = vmatprep.subr.mxu0 0.0
        %2085 = vmatpush1.xpose.msra.mxu0 0.0
        %2086 = vmatprep.subr.mxu0 0.0
        %2087 = vmatpush1.xpose.msra.mxu0 0.0
        %2088 = vmatprep.subr.mxu0 0.0
        %2089 = vmatpush1.xpose.msra.mxu0 0.0
        %2090 = vmatprep.subr.mxu0 0.0
        %2091 = vmatpush1.xpose.msra.mxu0 0.0
        %2092 = vmatprep.subr.mxu0 0.0
        %2093 = vmatpush1.xpose.msra.mxu0 0.0
        %2094 = vmatprep.subr.mxu0 0.0
        %2095 = vmatpush1.xpose.msra.mxu0 0.0
        %2096 = vmatprep.subr.mxu0 0.0
        %2097 = vmatpush1.xpose.msra.mxu0 0.0
        %2098 = vmatprep.subr.mxu0 0.0
        %2099 = vmatpush1.xpose.msra.mxu0 0.0
        %2100 = vmatprep.subr.mxu0 0.0
        %2101 = vmatpush1.xpose.msra.mxu0 0.0
        %2102 = vmatprep.subr.mxu0 0.0
        %2103 = vmatpush1.xpose.msra.mxu0 0.0
        %2104 = vmatprep.mubr.f32.mxu0 0.0
        %2105 = vmatmul.mubr.f32.gmra.mrb[0].mxu0 %v2026
        %v2106 = vpop.f32.mrb[0].mxu0
        %v2107 = vadd.f32 %v2017, %v2106
        %v2108 = vpop.f32.mrb[0].mxu0
        %2109 = vdwg.mxu0
        %vm2110 = vcmask 256000
        %2111 = vst.msk [vmem:[%s441] sm:$0x7] %vm2110, %v2107
        %s2112 = sand.u32 %s276, 1
        %s2113 = scalar_lea.sflag [#allocation3], %s2112
        %s2114 = sand.u32 %s276, 1
        %s2115 = scalar_lea.vmem [#allocation2], %s2114
        %p2116 = scmp.lt.s32.totalorder %s27, 1
        %s2117 = scalar_select %p2116, %s27, 1
        %s2118 = smul.addr %s2117, 4
        %s2119 = scalar_lea.vmem %s12, %s2118
        // Predicated region
        $region65: #{tpu_custom_call.1} parent=63 // pred_check
          %p2120 = pneg %p286
        $region66: #{tpu_custom_call.1} parent=63 // pred_check_branch
          %2122 = sbr.rel (%p2120) target = $region68
        $region67: #{tpu_custom_call.1} parent=63 // pred_region
          %s2124 = ssub.s32 16, 16
          %2125 = vsyncadd %s2113, %s2124
          %s2126 = smul.addr %s27, 16
          %s2127 = scalar_lea.hbm %s11, %s2126
          %s2129 = sshll.u32 %s2115, 4
          %s2130 = int_to_ptr.vmem [resolvable:$true] %s2129
          %2132 = dma.vmem_to_hbm [thread:$0]  %s2130, 16, %s2127, %s2113
        $region68: #{tpu_custom_call.1} parent=63 // pred_fallthru
          _
        // Predicated region
        $region69: #{tpu_custom_call.1} parent=63 // pred_check
          %p2133 = pneg %p312
        $region70: #{tpu_custom_call.1} parent=63 // pred_check_branch
          %2135 = sbr.rel (%p2133) target = $region72
        $region71: #{tpu_custom_call.1} parent=63 // pred_region
          _
        $region72: #{tpu_custom_call.1} parent=63 // pred_fallthru
          _
      $region64: #{tpu_custom_call.1} parent=5 // pred_fallthru
        _
      %p2136 = scmp.le.s32.totalorder 2, %s22
      // Predicated region
      $region73: #{tpu_custom_call.1} parent=5 // pred_check
        %p2137 = pneg %p2136
      $region74: #{tpu_custom_call.1} parent=5 // pred_check_branch
        %2139 = sbr.rel (%p2137) target = $region76
      $region75: #{tpu_custom_call.1} parent=5 // pred_region
        %s2140 = ssub.s32 %s22, 2
        // Predicated region
        $region77: #{tpu_custom_call.1} parent=75 // pred_check
          %p2141 = pneg %p292
        $region78: #{tpu_custom_call.1} parent=75 // pred_check_branch
          %2143 = sbr.rel (%p2141) target = $region80
        $region79: #{tpu_custom_call.1} parent=75 // pred_region
          %s2144 = sand.u32 %s277, 1
          %s2145 = scalar_lea.sflag [#allocation3], %s2144
          %s2146 = sand.u32 %s277, 1
          %s2147 = scalar_lea.vmem [#allocation2], %s2146
          %2148 = dma.done %s2145, 16
        $region80: #{tpu_custom_call.1} parent=75 // pred_fallthru
          _
        // Predicated region
        $region81: #{tpu_custom_call.1} parent=75 // pred_check
          %p2149 = pneg %p318
        $region82: #{tpu_custom_call.1} parent=75 // pred_check_branch
          %2151 = sbr.rel (%p2149) target = $region84
        $region83: #{tpu_custom_call.1} parent=75 // pred_region
          %p2152 = scmp.lt.s32.totalorder %s28, 1
          %s2153 = scalar_select %p2152, %s28, 1
          %s2154 = smul.addr %s2153, 4
          %s2155 = scalar_lea.vmem %s12, %s2154
        $region84: #{tpu_custom_call.1} parent=75 // pred_fallthru
          _
      $region76: #{tpu_custom_call.1} parent=5 // pred_fallthru
        _
    $region6: #{tpu_custom_call.1} parent=1 // loop_footer
      %s26 = sadd.s32 1, %s22
    $region7: #{tpu_custom_call.1} parent=1 // loop_footer_branch
      %21 = sbr.rel target = $region3
    $region8: #{tpu_custom_call.1} parent=1 // loop_exit
      _
    %2156 = vsyncpa [#allocation3], 1
    %s2157 = scalar_lea.sflag [#allocation3], 1
    %2158 = vsyncpa %s2157, 1

</llo_original>
